<compile_context>
chip_gen: v6e
topology: v6e:2x2x1
jax: 0.10.0
libtpu: 0.0.40
codegen_flags: <defaults>
</compile_context>

<pallas_src>
import functools

import jax
import jax.numpy as jnp
from jax.experimental import pallas as pl
from jax.experimental.pallas import tpu as pltpu

LANE = 128          # vreg lane width
SUB = 8             # f32 sublane width
_DEF_MAX_TK = 4096  # default cap on the K (reduction) tile, multiple of 128


def _round_up(x, m):
    return (x + m - 1) // m * m


def _cdiv(a, b):
    return (a + b - 1) // b


def _vmem_limit_bytes():
    """Generation-aware VMEM cap: ~3/4 of physical, capped at 96 MiB.
    v5e/v6e (128 MiB physical) -> 96 MiB; v7x (64 MiB physical) -> 48 MiB."""
    cap = 128 * 1024 * 1024
    try:
        cap = int(getattr(pltpu.get_tpu_info(), "vmem_capacity_bytes", cap))
    except Exception:
        pass
    return int(min(cap * 3 // 4, 96 * 1024 * 1024))


# ----------------------------------------------------------------------------
# Fused kernel: backbone (both images) + cls_head
# ----------------------------------------------------------------------------
def _fused_siamese_kernel(x1_ref, x2_ref, wb_ref, bb_ref,
                          w1_ref, b1_ref, w2_ref, b2_ref, w3_ref, b3_ref,
                          prob_ref, logit_ref, feat_acc):
    k = pl.program_id(0)
    nk = pl.num_programs(0)
    b_pad = x1_ref.shape[0]

    @pl.when(k == 0)
    def _():
        feat_acc[...] = jnp.zeros_like(feat_acc)

    # Shared-backbone partial matmuls: both images accumulate into the two
    # row-halves of the f32 VMEM scratch, so the K-tiled weight block is
    # streamed exactly once per step.  bf16 inputs, f32 MXU accumulation.
    feat_acc[:b_pad, :] += jnp.dot(x1_ref[...], wb_ref[...],
                                   preferred_element_type=jnp.float32)
    feat_acc[b_pad:, :] += jnp.dot(x2_ref[...], wb_ref[...],
                                   preferred_element_type=jnp.float32)

    @pl.when(k == nk - 1)
    def _():
        f_pad = feat_acc.shape[1]          # lane-padded feature dim
        bias = bb_ref[...]                 # (1, f_pad), f32

        # Ref-level (sublane-aligned) slices of the scratch -> zero-cost views.
        # Head matmuls run in bf16 with f32 accumulation.
        f1 = (feat_acc[:b_pad, :] + bias).astype(jnp.bfloat16)
        f2 = (feat_acc[b_pad:, :] + bias).astype(jnp.bfloat16)

        # cat([f1, f2], -1) @ W1 == f1 @ W1[:F] + f2 @ W1[F:]
        # (W1 rows are pre-padded so the split point f_pad is tile-aligned.)
        h = (jnp.dot(f1, w1_ref[:f_pad, :], preferred_element_type=jnp.float32)
             + jnp.dot(f2, w1_ref[f_pad:, :], preferred_element_type=jnp.float32)
             + b1_ref[...])
        h = jnp.maximum(h, 0.0).astype(jnp.bfloat16)                      # ReLU
        h = jnp.dot(h, w2_ref[...], preferred_element_type=jnp.float32) + b2_ref[...]
        h = jnp.maximum(h, 0.0)                                           # ReLU

        # Final Linear(64 -> 1): VPU multiply + lane reduce instead of an
        # N=1 MXU matmul; padded lanes of h / w3 are zero so the sum is exact.
        logits = jnp.sum(h * w3_ref[...], axis=-1, keepdims=True) + b3_ref[0]
        prob = jax.nn.sigmoid(logits)                    # torch.sigmoid(logits)

        # Lane-broadcast -> full 128-lane (unmasked) stores; wrapper slices.
        prob_ref[...] = jnp.broadcast_to(prob, prob_ref.shape)
        logit_ref[...] = jnp.broadcast_to(logits, logit_ref.shape)


# ----------------------------------------------------------------------------
# One-time parameter preparation (hoisted out of the per-call hot path)
# ----------------------------------------------------------------------------
def prepare_siamese_params(backbone_params, head_params, *, max_tk=_DEF_MAX_TK):
    """Pad / cast all weights once; returns arrays + static K-tile size."""
    wb, bb = backbone_params
    w1, b1, w2, b2, w3, b3 = head_params

    d, feat = wb.shape
    h1 = w1.shape[1]            # 512
    h2 = w2.shape[1]            # 64

    # K tiling without over-padding: round D up to 128 first, then split into
    # nk equal 128-multiple tiles (nk=1 when it fits under max_tk).
    max_tk = max(LANE, _round_up(max_tk, LANE))
    d128 = _round_up(d, LANE)
    if d128 <= max_tk:
        nk, tk = 1, d128
    else:
        nk = _cdiv(d128, max_tk)
        tk = LANE * _cdiv(d128 // LANE, nk)
    d_pad = nk * tk                                   # <= d128 + (nk-1)*128

    # FEAT padded to 256 when large (v6e/v7x MXU is 256-wide in N); small FEAT
    # stays at one 128-lane tile.  Hidden dims to the 128-lane boundary.
    feat_pad = _round_up(feat, 256) if feat > LANE else LANE
    h1_pad = max(LANE, _round_up(h1, LANE))
    h2_pad = max(LANE, _round_up(h2, LANE))

    # Backbone weights: bf16 stream (f32 accumulation in-kernel).
    wb_p = jnp.pad(wb.astype(jnp.bfloat16),
                   ((0, d_pad - d), (0, feat_pad - feat)))
    bb_p = jnp.pad(bb.reshape(1, feat).astype(jnp.float32),
                   ((0, 0), (0, feat_pad - feat)))

    # Head weights (bf16), padded so the in-kernel W1 split point is feat_pad.
    w1_p = jnp.zeros((2 * feat_pad, h1_pad), jnp.bfloat16)
    w1_p = w1_p.at[:feat, :h1].set(w1[:feat].astype(jnp.bfloat16))
    w1_p = w1_p.at[feat_pad:feat_pad + feat, :h1].set(w1[feat:].astype(jnp.bfloat16))
    b1_p = jnp.pad(b1.reshape(1, h1).astype(jnp.float32), ((0, 0), (0, h1_pad - h1)))
    w2_p = jnp.pad(w2.astype(jnp.bfloat16), ((0, h1_pad - h1), (0, h2_pad - h2)))
    b2_p = jnp.pad(b2.reshape(1, h2).astype(jnp.float32), ((0, 0), (0, h2_pad - h2)))
    w3_row = jnp.pad(w3.reshape(1, h2).astype(jnp.float32), ((0, 0), (0, h2_pad - h2)))
    b3_s = b3.reshape(1).astype(jnp.float32)          # scalar bias -> SMEM

    arrays = (wb_p, bb_p, w1_p, b1_p, w2_p, b2_p, w3_row, b3_s)
    return {"arrays": arrays, "tk": int(tk)}


# ----------------------------------------------------------------------------
# Forward: per-call image prep + pallas_call
# ----------------------------------------------------------------------------
@functools.partial(jax.jit, static_argnames=("tk",))
def _siamese_forward_padded(img1, img2, wb_p, bb_p, w1_p, b1_p, w2_p, b2_p,
                            w3_row, b3_s, *, tk):
    batch = img1.shape[0]
    x1 = img1.reshape(batch, -1)
    x2 = img2.reshape(batch, -1)
    d = x1.shape[1]

    d_pad, feat_pad = wb_p.shape
    h1_pad = w1_p.shape[1]
    h2_pad = w2_p.shape[1]
    nk = d_pad // tk
    b_pad = max(SUB, _round_up(batch, SUB))

    # Per-call work is only the (tiny) image flatten/pad + bf16 cast.
    def pad_img(x):
        return jnp.pad(x.astype(jnp.float32),
                       ((0, b_pad - batch), (0, d_pad - d))).astype(jnp.bfloat16)

    x1p, x2p = pad_img(x1), pad_img(x2)

    # Advisory cost estimate for XLA's scheduler.
    flops = (2 * (2 * b_pad) * d_pad * feat_pad
             + 2 * b_pad * (2 * feat_pad) * h1_pad
             + 2 * b_pad * h1_pad * h2_pad
             + 2 * b_pad * h2_pad)
    bytes_accessed = int(
        2 * (x1p.size + x2p.size + wb_p.size + w1_p.size + w2_p.size)
        + 4 * (bb_p.size + b1_p.size + b2_p.size + w3_row.size + 1)
        + 4 * (2 * b_pad * LANE))

    const = pl.Buffered(1)   # grid-invariant blocks: fetch once, single buffer

    prob_p, logit_p = pl.pallas_call(
        _fused_siamese_kernel,
        out_shape=(
            jax.ShapeDtypeStruct((b_pad, LANE), jnp.float32),   # sigmoid(logits)
            jax.ShapeDtypeStruct((b_pad, LANE), jnp.float32),   # logits
        ),
        grid_spec=pltpu.PrefetchScalarGridSpec(
            num_scalar_prefetch=0,
            grid=(nk,),                                          # K (reduction) axis
            in_specs=[
                pl.BlockSpec((b_pad, tk), lambda k: (0, k)),         # img1, bf16
                pl.BlockSpec((b_pad, tk), lambda k: (0, k)),         # img2, bf16
                pl.BlockSpec((tk, feat_pad), lambda k: (k, 0)),      # backbone W, bf16
                pl.BlockSpec((1, feat_pad), lambda k: (0, 0),
                             pipeline_mode=const),                   # backbone b
                pl.BlockSpec((2 * feat_pad, h1_pad), lambda k: (0, 0),
                             pipeline_mode=const),                   # head W1, bf16
                pl.BlockSpec((1, h1_pad), lambda k: (0, 0),
                             pipeline_mode=const),                   # head b1
                pl.BlockSpec((h1_pad, h2_pad), lambda k: (0, 0),
                             pipeline_mode=const),                   # head W2, bf16
                pl.BlockSpec((1, h2_pad), lambda k: (0, 0),
                             pipeline_mode=const),                   # head b2
                pl.BlockSpec((1, h2_pad), lambda k: (0, 0),
                             pipeline_mode=const),                   # head W3 (row)
                pl.BlockSpec(memory_space=pltpu.MemorySpace.SMEM),   # head b3 scalar
            ],
            out_specs=(
                pl.BlockSpec((b_pad, LANE), lambda k: (0, 0)),
                pl.BlockSpec((b_pad, LANE), lambda k: (0, 0)),
            ),
            scratch_shapes=[pltpu.VMEM((2 * b_pad, feat_pad), jnp.float32)],
        ),
        compiler_params=pltpu.CompilerParams(
            dimension_semantics=("arbitrary",),          # K is a reduction axis
            vmem_limit_bytes=_vmem_limit_bytes(),        # generation-aware cap
        ),
        cost_estimate=pl.CostEstimate(
            flops=flops, transcendentals=b_pad, bytes_accessed=bytes_accessed),
    )(x1p, x2p, wb_p, bb_p, w1_p, b1_p, w2_p, b2_p, w3_row, b3_s)

    return prob_p[:batch, :1], logit_p[:batch, :1]


def siamese_forward(img1, img2, prepared):
    return _siamese_forward_padded(img1, img2, *prepared["arrays"],
                                   tk=prepared["tk"])


# ----------------------------------------------------------------------------
# Deterministic parameter init + example run
# ----------------------------------------------------------------------------
def _init(key, shape, fan_in):
    bound = 1.0 / jnp.sqrt(jnp.float32(fan_in))
    return jax.random.uniform(key, shape, jnp.float32, -bound, bound)


if __name__ == "__main__":
    key = jax.random.PRNGKey(0)
    ks = jax.random.split(key, 10)

    # Small shapes consistent with the module's forward structure.
    B, C, H, W = 2, 3, 16, 16          # NCHW images
    FEAT = 32                          # substitute backbone feature dim
    D = C * H * W                      # flattened image dim

    img1 = jax.random.normal(ks[0], (B, C, H, W), jnp.float32)
    img2 = jax.random.normal(ks[1], (B, C, H, W), jnp.float32)

    # Shared backbone projection (stand-in for ViT-B/16).
    wb = _init(ks[2], (D, FEAT), D)
    bb = _init(ks[3], (FEAT,), D)

    # cls_head: Linear(2*FEAT,512) -> ReLU -> Linear(512,64) -> ReLU -> Linear(64,1)
    w1 = _init(ks[4], (2 * FEAT, 512), 2 * FEAT)
    b1 = _init(ks[5], (512,), 2 * FEAT)
    w2 = _init(ks[6], (512, 64), 512)
    b2 = _init(ks[7], (64,), 512)
    w3 = _init(ks[8], (64, 1), 64)
    b3 = _init(ks[9], (1,), 64)

    # Weight prep happens once, outside the per-call path.
    prepared = prepare_siamese_params((wb, bb), (w1, b1, w2, b2, w3, b3))
    jax.block_until_ready(prepared["arrays"])

    prob, logits = siamese_forward(img1, img2, prepared)
    jax.block_until_ready((prob, logits))

    # Pure-JAX reference (f32) for a correctness sanity check.
    def ref_forward(i1, i2):
        f1 = i1.reshape(B, -1) @ wb + bb
        f2 = i2.reshape(B, -1) @ wb + bb
        comb = jnp.concatenate([f1, f2], axis=-1)
        hh = jnp.maximum(comb @ w1 + b1, 0.0)
        hh = jnp.maximum(hh @ w2 + b2, 0.0)
        lg = hh @ w3 + b3
        return jax.nn.sigmoid(lg), lg

    p_ref, l_ref = ref_forward(img1, img2)

    assert prob.shape == (B, 1) and logits.shape == (B, 1)
    assert bool(jnp.all(jnp.isfinite(prob))) and bool(jnp.all(jnp.isfinite(logits)))
    # bf16 activation/weight streaming (backbone + head) -> loose-ish tolerance.
    assert bool(jnp.allclose(logits, l_ref, atol=5e-2, rtol=5e-2))
    assert bool(jnp.allclose(prob, p_ref, atol=5e-2, rtol=5e-2))
    print("KERNEL_OK")
</pallas_src>

<mosaic_0001>
module attributes {stable_mosaic.version = 11 : i64} {
  func.func @_fused_siamese_kernel(%arg0: i32, %arg1: memref<8x768xbf16, #tpu.memory_space<vmem>>, %arg2: memref<8x768xbf16, #tpu.memory_space<vmem>>, %arg3: memref<768x128xbf16, #tpu.memory_space<vmem>>, %arg4: memref<1x128xf32, #tpu.memory_space<vmem>>, %arg5: memref<256x512xbf16, #tpu.memory_space<vmem>>, %arg6: memref<1x512xf32, #tpu.memory_space<vmem>>, %arg7: memref<512x128xbf16, #tpu.memory_space<vmem>>, %arg8: memref<1x128xf32, #tpu.memory_space<vmem>>, %arg9: memref<1x128xf32, #tpu.memory_space<vmem>>, %arg10: memref<1xf32, #tpu.memory_space<smem>>, %arg11: memref<8x128xf32, #tpu.memory_space<vmem>>, %arg12: memref<8x128xf32, #tpu.memory_space<vmem>>, %arg13: memref<16x128xf32, #tpu.memory_space<vmem>>) attributes {dimension_semantics = [#tpu.dimension_semantics<arbitrary>], iteration_bounds = array<i64: 1>, scalar_prefetch = 0 : i64, scratch_operands = 1 : i64, tpu.core_type = #tpu.core_type<tc>, window_params = [{transform_indices = @transform_0, window_bounds = array<i64: 8, 768>}, {transform_indices = @transform_1, window_bounds = array<i64: 8, 768>}, {transform_indices = @transform_2, window_bounds = array<i64: 768, 128>}, {pipeline_mode = #tpu.pipeline_mode<synchronous>, transform_indices = @transform_3, window_bounds = array<i64: 1, 128>}, {pipeline_mode = #tpu.pipeline_mode<synchronous>, transform_indices = @transform_4, window_bounds = array<i64: 256, 512>}, {pipeline_mode = #tpu.pipeline_mode<synchronous>, transform_indices = @transform_5, window_bounds = array<i64: 1, 512>}, {pipeline_mode = #tpu.pipeline_mode<synchronous>, transform_indices = @transform_6, window_bounds = array<i64: 512, 128>}, {pipeline_mode = #tpu.pipeline_mode<synchronous>, transform_indices = @transform_7, window_bounds = array<i64: 1, 128>}, {pipeline_mode = #tpu.pipeline_mode<synchronous>, transform_indices = @transform_8, window_bounds = array<i64: 1, 128>}, {transform_indices = @transform_9, window_bounds = array<i64: 1>}, {pipeline_mode = #tpu.pipeline_mode<synchronous>, transform_indices = @transform_10, window_bounds = array<i64: 8, 128>}, {pipeline_mode = #tpu.pipeline_mode<synchronous>, transform_indices = @transform_11, window_bounds = array<i64: 8, 128>}]} {
    %c0_i32 = arith.constant 0 : i32
    %0 = arith.cmpi eq, %arg0, %c0_i32 : i32
    %1 = arith.extui %0 : i1 to i32
    %c0_i32_0 = arith.constant 0 : i32
    %2 = arith.cmpi ne, %1, %c0_i32_0 : i32
    scf.if %2 {
      %cst_18 = arith.constant 0.000000e+00 : f32
      %18 = vector.broadcast %cst_18 : f32 to vector<16x128xf32>
      %c0_19 = arith.constant 0 : index
      %c0_20 = arith.constant 0 : index
      %19 = vector.load %arg13[%c0_19, %c0_20] : memref<16x128xf32, #tpu.memory_space<vmem>>, vector<16x128xf32>
      tpu.vector_store %arg13[%c0_19, %c0_20], %18 {strides = array<i32>} : memref<16x128xf32, #tpu.memory_space<vmem>>, vector<16x128xf32>,
    } else {
    }
    %c0 = arith.constant 0 : index
    %c0_1 = arith.constant 0 : index
    %3 = vector.load %arg13[%c0, %c0_1] : memref<16x128xf32, #tpu.memory_space<vmem>>, vector<8x128xf32>
    %c0_2 = arith.constant 0 : index
    %c0_3 = arith.constant 0 : index
    %4 = vector.load %arg1[%c0_2, %c0_3] : memref<8x768xbf16, #tpu.memory_space<vmem>>, vector<8x768xbf16>
    %c0_4 = arith.constant 0 : index
    %c0_5 = arith.constant 0 : index
    %5 = vector.load %arg3[%c0_4, %c0_5] : memref<768x128xbf16, #tpu.memory_space<vmem>>, vector<768x128xbf16>
    %cst = arith.constant dense<0.000000e+00> : vector<8x128xf32>
    %6 = tpu.matmul %4, %5, %cst {dimension_numbers = #tpu.dot_dimension_numbers<[1], [0], [0], [1], [0, 0, 1, 1], [], []>} : vector<8x768xbf16>, vector<768x128xbf16>, vector<8x128xf32> -> vector<8x128xf32>
    %7 = arith.addf %3, %6 : vector<8x128xf32>
    %c0_6 = arith.constant 0 : index
    %c0_7 = arith.constant 0 : index
    %8 = vector.load %arg13[%c0_6, %c0_7] : memref<16x128xf32, #tpu.memory_space<vmem>>, vector<8x128xf32>
    tpu.vector_store %arg13[%c0_6, %c0_7], %7 {strides = array<i32>} : memref<16x128xf32, #tpu.memory_space<vmem>>, vector<8x128xf32>,
    %c8 = arith.constant 8 : index
    %c0_8 = arith.constant 0 : index
    %9 = vector.load %arg13[%c8, %c0_8] : memref<16x128xf32, #tpu.memory_space<vmem>>, vector<8x128xf32>
    %c0_9 = arith.constant 0 : index
    %c0_10 = arith.constant 0 : index
    %10 = vector.load %arg2[%c0_9, %c0_10] : memref<8x768xbf16, #tpu.memory_space<vmem>>, vector<8x768xbf16>
    %c0_11 = arith.constant 0 : index
    %c0_12 = arith.constant 0 : index
    %11 = vector.load %arg3[%c0_11, %c0_12] : memref<768x128xbf16, #tpu.memory_space<vmem>>, vector<768x128xbf16>
    %cst_13 = arith.constant dense<0.000000e+00> : vector<8x128xf32>
    %12 = tpu.matmul %10, %11, %cst_13 {dimension_numbers = #tpu.dot_dimension_numbers<[1], [0], [0], [1], [0, 0, 1, 1], [], []>} : vector<8x768xbf16>, vector<768x128xbf16>, vector<8x128xf32> -> vector<8x128xf32>
    %13 = arith.addf %9, %12 : vector<8x128xf32>
    %c8_14 = arith.constant 8 : index
    %c0_15 = arith.constant 0 : index
    %14 = vector.load %arg13[%c8_14, %c0_15] : memref<16x128xf32, #tpu.memory_space<vmem>>, vector<8x128xf32>
    tpu.vector_store %arg13[%c8_14, %c0_15], %13 {strides = array<i32>} : memref<16x128xf32, #tpu.memory_space<vmem>>, vector<8x128xf32>,
    %c0_i32_16 = arith.constant 0 : i32
    %15 = arith.cmpi eq, %arg0, %c0_i32_16 : i32
    %16 = arith.extui %15 : i1 to i32
    %c0_i32_17 = arith.constant 0 : i32
    %17 = arith.cmpi ne, %16, %c0_i32_17 : i32
    scf.if %17 {
      %c0_18 = arith.constant 0 : index
      %c0_19 = arith.constant 0 : index
      %18 = vector.load %arg4[%c0_18, %c0_19] : memref<1x128xf32, #tpu.memory_space<vmem>>, vector<1x128xf32>
      %c0_20 = arith.constant 0 : index
      %c0_21 = arith.constant 0 : index
      %19 = vector.load %arg13[%c0_20, %c0_21] : memref<16x128xf32, #tpu.memory_space<vmem>>, vector<8x128xf32>
      %20 = vector.broadcast %18 : vector<1x128xf32> to vector<8x128xf32>
      %21 = arith.addf %19, %20 : vector<8x128xf32>
      %22 = arith.truncf %21 : vector<8x128xf32> to vector<8x128xbf16>
      %c8_22 = arith.constant 8 : index
      %c0_23 = arith.constant 0 : index
      %23 = vector.load %arg13[%c8_22, %c0_23] : memref<16x128xf32, #tpu.memory_space<vmem>>, vector<8x128xf32>
      %24 = vector.broadcast %18 : vector<1x128xf32> to vector<8x128xf32>
      %25 = arith.addf %23, %24 : vector<8x128xf32>
      %26 = arith.truncf %25 : vector<8x128xf32> to vector<8x128xbf16>
      %c0_24 = arith.constant 0 : index
      %c0_25 = arith.constant 0 : index
      %27 = vector.load %arg5[%c0_24, %c0_25] : memref<256x512xbf16, #tpu.memory_space<vmem>>, vector<128x512xbf16>
      %cst_26 = arith.constant dense<0.000000e+00> : vector<8x512xf32>
      %28 = tpu.matmul %22, %27, %cst_26 {dimension_numbers = #tpu.dot_dimension_numbers<[1], [0], [0], [1], [0, 0, 1, 1], [], []>} : vector<8x128xbf16>, vector<128x512xbf16>, vector<8x512xf32> -> vector<8x512xf32>
      %c128 = arith.constant 128 : index
      %c0_27 = arith.constant 0 : index
      %29 = vector.load %arg5[%c128, %c0_27] : memref<256x512xbf16, #tpu.memory_space<vmem>>, vector<128x512xbf16>
      %cst_28 = arith.constant dense<0.000000e+00> : vector<8x512xf32>
      %30 = tpu.matmul %26, %29, %cst_28 {dimension_numbers = #tpu.dot_dimension_numbers<[1], [0], [0], [1], [0, 0, 1, 1], [], []>} : vector<8x128xbf16>, vector<128x512xbf16>, vector<8x512xf32> -> vector<8x512xf32>
      %31 = arith.addf %28, %30 : vector<8x512xf32>
      %c0_29 = arith.constant 0 : index
      %c0_30 = arith.constant 0 : index
      %32 = vector.load %arg6[%c0_29, %c0_30] : memref<1x512xf32, #tpu.memory_space<vmem>>, vector<1x512xf32>
      %33 = vector.broadcast %32 : vector<1x512xf32> to vector<8x512xf32>
      %34 = arith.addf %31, %33 : vector<8x512xf32>
      %cst_31 = arith.constant 0.000000e+00 : f32
      %35 = vector.broadcast %cst_31 : f32 to vector<8x512xf32>
      %36 = arith.maximumf %34, %35 : vector<8x512xf32>
      %37 = arith.truncf %36 : vector<8x512xf32> to vector<8x512xbf16>
      %c0_32 = arith.constant 0 : index
      %c0_33 = arith.constant 0 : index
      %38 = vector.load %arg7[%c0_32, %c0_33] : memref<512x128xbf16, #tpu.memory_space<vmem>>, vector<512x128xbf16>
      %cst_34 = arith.constant dense<0.000000e+00> : vector<8x128xf32>
      %39 = tpu.matmul %37, %38, %cst_34 {dimension_numbers = #tpu.dot_dimension_numbers<[1], [0], [0], [1], [0, 0, 1, 1], [], []>} : vector<8x512xbf16>, vector<512x128xbf16>, vector<8x128xf32> -> vector<8x128xf32>
      %c0_35 = arith.constant 0 : index
      %c0_36 = arith.constant 0 : index
      %40 = vector.load %arg8[%c0_35, %c0_36] : memref<1x128xf32, #tpu.memory_space<vmem>>, vector<1x128xf32>
      %41 = vector.broadcast %40 : vector<1x128xf32> to vector<8x128xf32>
      %42 = arith.addf %39, %41 : vector<8x128xf32>
      %cst_37 = arith.constant 0.000000e+00 : f32
      %43 = vector.broadcast %cst_37 : f32 to vector<8x128xf32>
      %44 = arith.maximumf %42, %43 : vector<8x128xf32>
      %c0_38 = arith.constant 0 : index
      %c0_39 = arith.constant 0 : index
      %45 = vector.load %arg9[%c0_38, %c0_39] : memref<1x128xf32, #tpu.memory_space<vmem>>, vector<1x128xf32>
      %46 = vector.broadcast %45 : vector<1x128xf32> to vector<8x128xf32>
      %47 = arith.mulf %44, %46 : vector<8x128xf32>
      %cst_40 = arith.constant dense<0.000000e+00> : vector<8xf32>
      %48 = vector.multi_reduction <add>, %47, %cst_40 [1] : vector<8x128xf32> to vector<8xf32>
      %49 = vector.shape_cast %48 : vector<8xf32> to vector<8x1xf32>
      %c0_41 = arith.constant 0 : index
      %50 = memref.load %arg10[%c0_41] : memref<1xf32, #tpu.memory_space<smem>>
      %51 = vector.broadcast %50 : f32 to vector<8x1xf32>
      %52 = arith.addf %49, %51 : vector<8x1xf32>
      %53 = arith.negf %52 : vector<8x1xf32>
      %54 = math.exp %53 : vector<8x1xf32>
      %cst_42 = arith.constant 1.000000e+00 : f32
      %55 = vector.broadcast %cst_42 : f32 to vector<8x1xf32>
      %56 = arith.addf %55, %54 : vector<8x1xf32>
      %57 = arith.divf %55, %56 : vector<8x1xf32>
      %58 = vector.shape_cast %57 : vector<8x1xf32> to vector<8x1xf32>
      %59 = vector.broadcast %58 : vector<8x1xf32> to vector<8x128xf32>
      %c0_43 = arith.constant 0 : index
      %c0_44 = arith.constant 0 : index
      %60 = vector.load %arg11[%c0_43, %c0_44] : memref<8x128xf32, #tpu.memory_space<vmem>>, vector<8x128xf32>
      tpu.vector_store %arg11[%c0_43, %c0_44], %59 {strides = array<i32>} : memref<8x128xf32, #tpu.memory_space<vmem>>, vector<8x128xf32>,
      %61 = vector.shape_cast %52 : vector<8x1xf32> to vector<8x1xf32>
      %62 = vector.broadcast %61 : vector<8x1xf32> to vector<8x128xf32>
      %c0_45 = arith.constant 0 : index
      %c0_46 = arith.constant 0 : index
      %63 = vector.load %arg12[%c0_45, %c0_46] : memref<8x128xf32, #tpu.memory_space<vmem>>, vector<8x128xf32>
      tpu.vector_store %arg12[%c0_45, %c0_46], %62 {strides = array<i32>} : memref<8x128xf32, #tpu.memory_space<vmem>>, vector<8x128xf32>,
    } else {
    }
    return
  }
  func.func @transform_0(%arg0: i32) -> (i32, i32) {
    %c0_i32 = arith.constant 0 : i32
    %c0_i32_0 = arith.constant 0 : i32
    return %c0_i32, %arg0 : i32, i32
  }
  func.func @transform_1(%arg0: i32) -> (i32, i32) {
    %c0_i32 = arith.constant 0 : i32
    %c0_i32_0 = arith.constant 0 : i32
    return %c0_i32, %arg0 : i32, i32
  }
  func.func @transform_2(%arg0: i32) -> (i32, i32) {
    %c0_i32 = arith.constant 0 : i32
    %c0_i32_0 = arith.constant 0 : i32
    return %arg0, %c0_i32 : i32, i32
  }
  func.func @transform_3(%arg0: i32) -> (i32, i32) {
    %c0_i32 = arith.constant 0 : i32
    %c0_i32_0 = arith.constant 0 : i32
    %c0_i32_1 = arith.constant 0 : i32
    return %c0_i32, %c0_i32_0 : i32, i32
  }
  func.func @transform_4(%arg0: i32) -> (i32, i32) {
    %c0_i32 = arith.constant 0 : i32
    %c0_i32_0 = arith.constant 0 : i32
    %c0_i32_1 = arith.constant 0 : i32
    return %c0_i32, %c0_i32_0 : i32, i32
  }
  func.func @transform_5(%arg0: i32) -> (i32, i32) {
    %c0_i32 = arith.constant 0 : i32
    %c0_i32_0 = arith.constant 0 : i32
    %c0_i32_1 = arith.constant 0 : i32
    return %c0_i32, %c0_i32_0 : i32, i32
  }
  func.func @transform_6(%arg0: i32) -> (i32, i32) {
    %c0_i32 = arith.constant 0 : i32
    %c0_i32_0 = arith.constant 0 : i32
    %c0_i32_1 = arith.constant 0 : i32
    return %c0_i32, %c0_i32_0 : i32, i32
  }
  func.func @transform_7(%arg0: i32) -> (i32, i32) {
    %c0_i32 = arith.constant 0 : i32
    %c0_i32_0 = arith.constant 0 : i32
    %c0_i32_1 = arith.constant 0 : i32
    return %c0_i32, %c0_i32_0 : i32, i32
  }
  func.func @transform_8(%arg0: i32) -> (i32, i32) {
    %c0_i32 = arith.constant 0 : i32
    %c0_i32_0 = arith.constant 0 : i32
    %c0_i32_1 = arith.constant 0 : i32
    return %c0_i32, %c0_i32_0 : i32, i32
  }
  func.func @transform_9(%arg0: i32) -> i32 {
    %c0_i32 = arith.constant 0 : i32
    %c0_i32_0 = arith.constant 0 : i32
    return %c0_i32 : i32
  }
  func.func @transform_10(%arg0: i32) -> (i32, i32) {
    %c0_i32 = arith.constant 0 : i32
    %c0_i32_0 = arith.constant 0 : i32
    %c0_i32_1 = arith.constant 0 : i32
    return %c0_i32, %c0_i32_0 : i32, i32
  }
  func.func @transform_11(%arg0: i32) -> (i32, i32) {
    %c0_i32 = arith.constant 0 : i32
    %c0_i32_0 = arith.constant 0 : i32
    %c0_i32_1 = arith.constant 0 : i32
    return %c0_i32, %c0_i32_0 : i32, i32
  }
}

</mosaic_0001>

<llo_original>
// kernel: _siamese_forward_padded.1
$region0: #{_siamese_forward_padded.1}
  #allocation0 [shape = 'u32[]', space=smem, size = 0x4, offset = 0x4, fixed_abs, tag = 'smem constant byte address 0x4 - core index']
  #allocation1 [shape = 'u32[144,128]{1,0:T(1,128)}', space=vmem, size = 0x12000, scoped, tag = 'internal scratch']
  #allocation2 [shape = 'f32[16,128]{1,0:T(8,128)}', space=vmem, size = 0x2000, scoped, tag = 'scratch operand']
  #allocation3 [shape = 'f32[1]{0:T(128)S(6)}', space=smem, size = 0x200, scoped, tag = 'scoped memory for _siamese_forward_padded.1']
  %s0 = inlined_call_operand.vmem [shape: bf16[8,768], index: 0, kind: input, shape index: {}]
  %s1 = inlined_call_operand.vmem [shape: bf16[8,768], index: 1, kind: input, shape index: {}]
  %s2 = inlined_call_operand.vmem [shape: bf16[768,128], index: 2, kind: input, shape index: {}]
  %s3 = inlined_call_operand.vmem [shape: f32[1,128], index: 3, kind: input, shape index: {}]
  %s4 = inlined_call_operand.hbm [shape: bf16[256,512], index: 4, kind: input, shape index: {}]
  %s5 = inlined_call_operand.vmem [shape: f32[1,512], index: 5, kind: input, shape index: {}]
  %s6 = inlined_call_operand.hbm [shape: bf16[512,128], index: 6, kind: input, shape index: {}]
  %s7 = inlined_call_operand.vmem [shape: f32[1,128], index: 7, kind: input, shape index: {}]
  %s8 = inlined_call_operand.vmem [shape: f32[1,128], index: 8, kind: input, shape index: {}]
  %s9 = inlined_call_operand.<no memory space> [shape: f32[1], index: 9, kind: input, shape index: {}]
  %s10 = inlined_call_operand.vmem [shape: f32[8,128], index: 10, kind: output, shape index: {0}]
  %s11 = inlined_call_operand.vmem [shape: f32[8,128], index: 11, kind: output, shape index: {1}]
  %12 = xla_tuple %s10, %s11
  %s13 = sld [smem:[#allocation0]]
  $region74: #{_siamese_forward_padded.1} parent=0
    _
  %s15 = ssub.s32 1, %s13
  %s16 = scalar_select 0, %s15, %s13
  %17 = sst [smem:[#allocation3]] %s9
  $region1: #{_siamese_forward_padded.1} parent=0
    #allocation4 [shape = 'u8[262144]{0}', space=vmem, size = 0x40000, scoped, tag = 'input window, operand 4, single buffered']
    #allocation5 [shape = 's32[1]{0}', space=sflag, size = 0x4, scoped, tag = 'scoped memory for _siamese_forward_padded.1']
    #allocation6 [shape = 'u8[131072]{0}', space=vmem, size = 0x20000, scoped, tag = 'input window, operand 6, single buffered']
    #allocation7 [shape = 's32[1]{0}', space=sflag, size = 0x4, scoped, tag = 'scoped memory for _siamese_forward_padded.1']
    %18 = vsyncpa [#allocation5], 0
    %19 = vsyncpa [#allocation7], 0
    // Predicated region
    $region2: #{_siamese_forward_padded.1} parent=1 // pred_check
      _
    $region3: #{_siamese_forward_padded.1} parent=1 // pred_check_branch
      %21 = sbr.rel (0) target = $region5
    $region4: #{_siamese_forward_padded.1} parent=1 // pred_region
      _
    $region5: #{_siamese_forward_padded.1} parent=1 // pred_fallthru
      _
    // Predicated region
    $region6: #{_siamese_forward_padded.1} parent=1 // pred_check
      _
    $region7: #{_siamese_forward_padded.1} parent=1 // pred_check_branch
      %23 = sbr.rel (0) target = $region9
    $region8: #{_siamese_forward_padded.1} parent=1 // pred_region
      _
    $region9: #{_siamese_forward_padded.1} parent=1 // pred_fallthru
      _
    // Predicated region
    $region10: #{_siamese_forward_padded.1} parent=1 // pred_check
      _
    $region11: #{_siamese_forward_padded.1} parent=1 // pred_check_branch
      %25 = sbr.rel (0) target = $region13
    $region12: #{_siamese_forward_padded.1} parent=1 // pred_region
      _
    $region13: #{_siamese_forward_padded.1} parent=1 // pred_fallthru
      _
    // Predicated region
    $region14: #{_siamese_forward_padded.1} parent=1 // pred_check
      _
    $region15: #{_siamese_forward_padded.1} parent=1 // pred_check_branch
      %27 = sbr.rel (0) target = $region17
    $region16: #{_siamese_forward_padded.1} parent=1 // pred_region
      _
    $region17: #{_siamese_forward_padded.1} parent=1 // pred_fallthru
      _
    // Predicated region
    $region18: #{_siamese_forward_padded.1} parent=1 // pred_check
      _
    $region19: #{_siamese_forward_padded.1} parent=1 // pred_check_branch
      %29 = sbr.rel (0) target = $region21
    $region20: #{_siamese_forward_padded.1} parent=1 // pred_region
      %s31 = ssub.s32 8192, 8192
      %32 = vsyncadd [#allocation5], %s31
      %s33 = sshll.u32 [#allocation4], 4
      %s34 = int_to_ptr.vmem [resolvable:$true] %s33
      %39 = dma.hbm_to_vmem [thread:$0]  %s4, 8192, %s34, [#allocation5], 256, 256, 16
    $region21: #{_siamese_forward_padded.1} parent=1 // pred_fallthru
      _
    // Predicated region
    $region22: #{_siamese_forward_padded.1} parent=1 // pred_check
      _
    $region23: #{_siamese_forward_padded.1} parent=1 // pred_check_branch
      %41 = sbr.rel (0) target = $region25
    $region24: #{_siamese_forward_padded.1} parent=1 // pred_region
      _
    $region25: #{_siamese_forward_padded.1} parent=1 // pred_fallthru
      _
    // Predicated region
    $region26: #{_siamese_forward_padded.1} parent=1 // pred_check
      _
    $region27: #{_siamese_forward_padded.1} parent=1 // pred_check_branch
      %43 = sbr.rel (0) target = $region29
    $region28: #{_siamese_forward_padded.1} parent=1 // pred_region
      %s45 = ssub.s32 4096, 4096
      %46 = vsyncadd [#allocation7], %s45
      %s47 = sshll.u32 [#allocation6], 4
      %s48 = int_to_ptr.vmem [resolvable:$true] %s47
      %53 = dma.hbm_to_vmem [thread:$0]  %s6, 4096, %s48, [#allocation7], 64, 64, 4
    $region29: #{_siamese_forward_padded.1} parent=1 // pred_fallthru
      _
    // Predicated region
    $region30: #{_siamese_forward_padded.1} parent=1 // pred_check
      _
    $region31: #{_siamese_forward_padded.1} parent=1 // pred_check_branch
      %55 = sbr.rel (0) target = $region33
    $region32: #{_siamese_forward_padded.1} parent=1 // pred_region
      _
    $region33: #{_siamese_forward_padded.1} parent=1 // pred_fallthru
      _
    // Predicated region
    $region34: #{_siamese_forward_padded.1} parent=1 // pred_check
      _
    $region35: #{_siamese_forward_padded.1} parent=1 // pred_check_branch
      %57 = sbr.rel (0) target = $region37
    $region36: #{_siamese_forward_padded.1} parent=1 // pred_region
      _
    $region37: #{_siamese_forward_padded.1} parent=1 // pred_fallthru
      _
    // Predicated region
    $region38: #{_siamese_forward_padded.1} parent=1 // pred_check
      _
    $region39: #{_siamese_forward_padded.1} parent=1 // pred_check_branch
      %59 = sbr.rel (0) target = $region41
    $region40: #{_siamese_forward_padded.1} parent=1 // pred_region
      _
    $region41: #{_siamese_forward_padded.1} parent=1 // pred_fallthru
      _
    // Predicated region
    $region42: #{_siamese_forward_padded.1} parent=1 // pred_check
      _
    $region43: #{_siamese_forward_padded.1} parent=1 // pred_check_branch
      %61 = sbr.rel (0) target = $region45
    $region44: #{_siamese_forward_padded.1} parent=1 // pred_region
      %62 = dma.done [#allocation5], 8192
    $region45: #{_siamese_forward_padded.1} parent=1 // pred_fallthru
      _
    // Predicated region
    $region46: #{_siamese_forward_padded.1} parent=1 // pred_check
      _
    $region47: #{_siamese_forward_padded.1} parent=1 // pred_check_branch
      %64 = sbr.rel (0) target = $region49
    $region48: #{_siamese_forward_padded.1} parent=1 // pred_region
      %65 = dma.done [#allocation7], 4096
    $region49: #{_siamese_forward_padded.1} parent=1 // pred_fallthru
      _
    %p67 = scmp.eq.s32.totalorder 0, 0
    // Predicated region
    $region50: #{_siamese_forward_padded.1} parent=1 // pred_check
      %p68 = pneg %p67
    $region51: #{_siamese_forward_padded.1} parent=1 // pred_check_branch
      %70 = sbr.rel (%p68) target = $region53
    $region52: #{_siamese_forward_padded.1} parent=1 // pred_region
      %71 = vst [vmem:[#allocation2] sm:$0xff] 0.0
      %72 = vst [vmem:[#allocation2 + $0x8] sm:$0xff] 0.0
    $region53: #{_siamese_forward_padded.1} parent=1 // pred_fallthru
      _
    %v73 = vld [vmem:[#allocation2] sm:$0xff]
    %v74 = vld [vmem:[%s0] sm:$0xff]
    %v75 = vld [vmem:[%s0 + $0x8] sm:$0xff]
    %v76 = vld [vmem:[%s0 + $0x10] sm:$0xff]
    %v77 = vld [vmem:[%s2] sm:$0xf]
    %v78 = vld [vmem:[%s2 + $0x4] sm:$0xf]
    %v79 = vld [vmem:[%s2 + $0x8] sm:$0xf]
    %v80 = vld [vmem:[%s2 + $0xc] sm:$0xf]
    %v81 = vld [vmem:[%s2 + $0x10] sm:$0xf]
    %v82 = vld [vmem:[%s2 + $0x14] sm:$0xf]
    %v83 = vld [vmem:[%s2 + $0x18] sm:$0xf]
    %v84 = vld [vmem:[%s2 + $0x1c] sm:$0xf]
    %v85 = vld [vmem:[%s2 + $0x20] sm:$0xf]
    %v86 = vld [vmem:[%s2 + $0x24] sm:$0xf]
    %v87 = vld [vmem:[%s2 + $0x28] sm:$0xf]
    %v88 = vld [vmem:[%s2 + $0x2c] sm:$0xf]
    %v89 = vld [vmem:[%s2 + $0x30] sm:$0xf]
    %v90 = vld [vmem:[%s2 + $0x34] sm:$0xf]
    %v91 = vld [vmem:[%s2 + $0x38] sm:$0xf]
    %v92 = vld [vmem:[%s2 + $0x3c] sm:$0xf]
    %v93 = vld [vmem:[%s2 + $0x40] sm:$0xf]
    %v94 = vld [vmem:[%s2 + $0x44] sm:$0xf]
    %v95 = vld [vmem:[%s2 + $0x48] sm:$0xf]
    %v96 = vld [vmem:[%s2 + $0x4c] sm:$0xf]
    %v97 = vld [vmem:[%s2 + $0x50] sm:$0xf]
    %v98 = vld [vmem:[%s2 + $0x54] sm:$0xf]
    %v99 = vld [vmem:[%s2 + $0x58] sm:$0xf]
    %v100 = vld [vmem:[%s2 + $0x5c] sm:$0xf]
    %v101 = vld [vmem:[%s2 + $0x60] sm:$0xf]
    %v102 = vld [vmem:[%s2 + $0x64] sm:$0xf]
    %v103 = vld [vmem:[%s2 + $0x68] sm:$0xf]
    %v104 = vld [vmem:[%s2 + $0x6c] sm:$0xf]
    %v105 = vld [vmem:[%s2 + $0x70] sm:$0xf]
    %v106 = vld [vmem:[%s2 + $0x74] sm:$0xf]
    %v107 = vld [vmem:[%s2 + $0x78] sm:$0xf]
    %v108 = vld [vmem:[%s2 + $0x7c] sm:$0xf]
    %v109 = vld [vmem:[%s2 + $0x80] sm:$0xf]
    %v110 = vld [vmem:[%s2 + $0x84] sm:$0xf]
    %v111 = vld [vmem:[%s2 + $0x88] sm:$0xf]
    %v112 = vld [vmem:[%s2 + $0x8c] sm:$0xf]
    %v113 = vld [vmem:[%s2 + $0x90] sm:$0xf]
    %v114 = vld [vmem:[%s2 + $0x94] sm:$0xf]
    %v115 = vld [vmem:[%s2 + $0x98] sm:$0xf]
    %v116 = vld [vmem:[%s2 + $0x9c] sm:$0xf]
    %v117 = vld [vmem:[%s2 + $0xa0] sm:$0xf]
    %v118 = vld [vmem:[%s2 + $0xa4] sm:$0xf]
    %v119 = vld [vmem:[%s2 + $0xa8] sm:$0xf]
    %v120 = vld [vmem:[%s2 + $0xac] sm:$0xf]
    %v121 = vld [vmem:[%s2 + $0xb0] sm:$0xf]
    %v122 = vld [vmem:[%s2 + $0xb4] sm:$0xf]
    %v123 = vld [vmem:[%s2 + $0xb8] sm:$0xf]
    %v124 = vld [vmem:[%s2 + $0xbc] sm:$0xf]
    %v125 = vld [vmem:[%s2 + $0xc0] sm:$0xf]
    %v126 = vld [vmem:[%s2 + $0xc4] sm:$0xf]
    %v127 = vld [vmem:[%s2 + $0xc8] sm:$0xf]
    %v128 = vld [vmem:[%s2 + $0xcc] sm:$0xf]
    %v129 = vld [vmem:[%s2 + $0xd0] sm:$0xf]
    %v130 = vld [vmem:[%s2 + $0xd4] sm:$0xf]
    %v131 = vld [vmem:[%s2 + $0xd8] sm:$0xf]
    %v132 = vld [vmem:[%s2 + $0xdc] sm:$0xf]
    %v133 = vld [vmem:[%s2 + $0xe0] sm:$0xf]
    %v134 = vld [vmem:[%s2 + $0xe4] sm:$0xf]
    %v135 = vld [vmem:[%s2 + $0xe8] sm:$0xf]
    %v136 = vld [vmem:[%s2 + $0xec] sm:$0xf]
    %v137 = vld [vmem:[%s2 + $0xf0] sm:$0xf]
    %v138 = vld [vmem:[%s2 + $0xf4] sm:$0xf]
    %v139 = vld [vmem:[%s2 + $0xf8] sm:$0xf]
    %v140 = vld [vmem:[%s2 + $0xfc] sm:$0xf]
    %v141 = vld [vmem:[%s2 + $0x100] sm:$0xf]
    %v142 = vld [vmem:[%s2 + $0x104] sm:$0xf]
    %v143 = vld [vmem:[%s2 + $0x108] sm:$0xf]
    %v144 = vld [vmem:[%s2 + $0x10c] sm:$0xf]
    %v145 = vld [vmem:[%s2 + $0x110] sm:$0xf]
    %v146 = vld [vmem:[%s2 + $0x114] sm:$0xf]
    %v147 = vld [vmem:[%s2 + $0x118] sm:$0xf]
    %v148 = vld [vmem:[%s2 + $0x11c] sm:$0xf]
    %v149 = vld [vmem:[%s2 + $0x120] sm:$0xf]
    %v150 = vld [vmem:[%s2 + $0x124] sm:$0xf]
    %v151 = vld [vmem:[%s2 + $0x128] sm:$0xf]
    %v152 = vld [vmem:[%s2 + $0x12c] sm:$0xf]
    %v153 = vld [vmem:[%s2 + $0x130] sm:$0xf]
    %v154 = vld [vmem:[%s2 + $0x134] sm:$0xf]
    %v155 = vld [vmem:[%s2 + $0x138] sm:$0xf]
    %v156 = vld [vmem:[%s2 + $0x13c] sm:$0xf]
    %v157 = vld [vmem:[%s2 + $0x140] sm:$0xf]
    %v158 = vld [vmem:[%s2 + $0x144] sm:$0xf]
    %v159 = vld [vmem:[%s2 + $0x148] sm:$0xf]
    %v160 = vld [vmem:[%s2 + $0x14c] sm:$0xf]
    %v161 = vld [vmem:[%s2 + $0x150] sm:$0xf]
    %v162 = vld [vmem:[%s2 + $0x154] sm:$0xf]
    %v163 = vld [vmem:[%s2 + $0x158] sm:$0xf]
    %v164 = vld [vmem:[%s2 + $0x15c] sm:$0xf]
    %v165 = vld [vmem:[%s2 + $0x160] sm:$0xf]
    %v166 = vld [vmem:[%s2 + $0x164] sm:$0xf]
    %v167 = vld [vmem:[%s2 + $0x168] sm:$0xf]
    %v168 = vld [vmem:[%s2 + $0x16c] sm:$0xf]
    %v169 = vld [vmem:[%s2 + $0x170] sm:$0xf]
    %v170 = vld [vmem:[%s2 + $0x174] sm:$0xf]
    %v171 = vld [vmem:[%s2 + $0x178] sm:$0xf]
    %v172 = vld [vmem:[%s2 + $0x17c] sm:$0xf]
    %v176 = vunpack.c.l.b16 %v74
    %v177 = vunpack.c.h.b16 %v74
    %v178 = vunpack.c.l.b16 %v75
    %v179 = vunpack.c.h.b16 %v75
    %v180 = vunpack.c.l.b16 %v76
    %v181 = vunpack.c.h.b16 %v76
    %v182 = vpack.c.b16 %v176, %v176
    %v183 = vpack.c.b16 %v177, %v177
    %v184 = vpack.c.b16 %v178, %v178
    %v185 = vpack.c.b16 %v179, %v179
    %v186 = vpack.c.b16 %v180, %v180
    %v187 = vpack.c.b16 %v181, %v181
    %v290 = vunpack.c.l.b16 %v77
    %v291 = vunpack.c.l.b16 %v78
    %v292 = vunpack.c.l.b16 %v79
    %v293 = vunpack.c.l.b16 %v80
    %v294 = vunpack.c.l.b16 %v81
    %v295 = vunpack.c.l.b16 %v82
    %v296 = vunpack.c.l.b16 %v83
    %v297 = vunpack.c.l.b16 %v84
    %v298 = vunpack.c.l.b16 %v85
    %v299 = vunpack.c.l.b16 %v86
    %v300 = vunpack.c.l.b16 %v87
    %v301 = vunpack.c.l.b16 %v88
    %v302 = vunpack.c.l.b16 %v89
    %v303 = vunpack.c.l.b16 %v90
    %v304 = vunpack.c.l.b16 %v91
    %v305 = vunpack.c.l.b16 %v92
    %v306 = vunpack.c.l.b16 %v93
    %v307 = vunpack.c.l.b16 %v94
    %v308 = vunpack.c.l.b16 %v95
    %v309 = vunpack.c.l.b16 %v96
    %v310 = vunpack.c.l.b16 %v97
    %v311 = vunpack.c.l.b16 %v98
    %v312 = vunpack.c.l.b16 %v99
    %v313 = vunpack.c.l.b16 %v100
    %v314 = vunpack.c.l.b16 %v101
    %v315 = vunpack.c.l.b16 %v102
    %v316 = vunpack.c.l.b16 %v103
    %v317 = vunpack.c.l.b16 %v104
    %v318 = vunpack.c.l.b16 %v105
    %v319 = vunpack.c.l.b16 %v106
    %v320 = vunpack.c.l.b16 %v107
    %v321 = vunpack.c.l.b16 %v108
    %v322 = vunpack.c.l.b16 %v109
    %v323 = vunpack.c.l.b16 %v110
    %v324 = vunpack.c.l.b16 %v111
    %v325 = vunpack.c.l.b16 %v112
    %v326 = vunpack.c.l.b16 %v113
    %v327 = vunpack.c.l.b16 %v114
    %v328 = vunpack.c.l.b16 %v115
    %v329 = vunpack.c.l.b16 %v116
    %v330 = vunpack.c.l.b16 %v117
    %v331 = vunpack.c.l.b16 %v118
    %v332 = vunpack.c.l.b16 %v119
    %v333 = vunpack.c.l.b16 %v120
    %v334 = vunpack.c.l.b16 %v121
    %v335 = vunpack.c.l.b16 %v122
    %v336 = vunpack.c.l.b16 %v123
    %v337 = vunpack.c.l.b16 %v124
    %v338 = vunpack.c.l.b16 %v125
    %v339 = vunpack.c.l.b16 %v126
    %v340 = vunpack.c.l.b16 %v127
    %v341 = vunpack.c.l.b16 %v128
    %v342 = vunpack.c.l.b16 %v129
    %v343 = vunpack.c.l.b16 %v130
    %v344 = vunpack.c.l.b16 %v131
    %v345 = vunpack.c.l.b16 %v132
    %v346 = vunpack.c.l.b16 %v133
    %v347 = vunpack.c.l.b16 %v134
    %v348 = vunpack.c.l.b16 %v135
    %v349 = vunpack.c.l.b16 %v136
    %v350 = vunpack.c.l.b16 %v137
    %v351 = vunpack.c.l.b16 %v138
    %v352 = vunpack.c.l.b16 %v139
    %v353 = vunpack.c.l.b16 %v140
    %v354 = vunpack.c.l.b16 %v141
    %v355 = vunpack.c.l.b16 %v142
    %v356 = vunpack.c.l.b16 %v143
    %v357 = vunpack.c.l.b16 %v144
    %v358 = vunpack.c.l.b16 %v145
    %v359 = vunpack.c.l.b16 %v146
    %v360 = vunpack.c.l.b16 %v147
    %v361 = vunpack.c.l.b16 %v148
    %v362 = vunpack.c.l.b16 %v149
    %v363 = vunpack.c.l.b16 %v150
    %v364 = vunpack.c.l.b16 %v151
    %v365 = vunpack.c.l.b16 %v152
    %v366 = vunpack.c.l.b16 %v153
    %v367 = vunpack.c.l.b16 %v154
    %v368 = vunpack.c.l.b16 %v155
    %v369 = vunpack.c.l.b16 %v156
    %v370 = vunpack.c.l.b16 %v157
    %v371 = vunpack.c.l.b16 %v158
    %v372 = vunpack.c.l.b16 %v159
    %v373 = vunpack.c.l.b16 %v160
    %v374 = vunpack.c.l.b16 %v161
    %v375 = vunpack.c.l.b16 %v162
    %v376 = vunpack.c.l.b16 %v163
    %v377 = vunpack.c.l.b16 %v164
    %v378 = vunpack.c.l.b16 %v165
    %v379 = vunpack.c.l.b16 %v166
    %v380 = vunpack.c.l.b16 %v167
    %v381 = vunpack.c.l.b16 %v168
    %v382 = vunpack.c.l.b16 %v169
    %v383 = vunpack.c.l.b16 %v170
    %v384 = vunpack.c.l.b16 %v171
    %v385 = vunpack.c.l.b16 %v172
    %v386 = vpack.c.b16 %v291, %v290
    %v387 = vpack.c.b16 %v293, %v292
    %v388 = vpack.c.b16 %v295, %v294
    %v389 = vpack.c.b16 %v297, %v296
    %v390 = vpack.c.b16 %v299, %v298
    %v391 = vpack.c.b16 %v301, %v300
    %v392 = vpack.c.b16 %v303, %v302
    %v393 = vpack.c.b16 %v305, %v304
    %v394 = vpack.c.b16 %v307, %v306
    %v395 = vpack.c.b16 %v309, %v308
    %v396 = vpack.c.b16 %v311, %v310
    %v397 = vpack.c.b16 %v313, %v312
    %v398 = vpack.c.b16 %v315, %v314
    %v399 = vpack.c.b16 %v317, %v316
    %v400 = vpack.c.b16 %v319, %v318
    %v401 = vpack.c.b16 %v321, %v320
    %v402 = vpack.c.b16 %v323, %v322
    %v403 = vpack.c.b16 %v325, %v324
    %v404 = vpack.c.b16 %v327, %v326
    %v405 = vpack.c.b16 %v329, %v328
    %v406 = vpack.c.b16 %v331, %v330
    %v407 = vpack.c.b16 %v333, %v332
    %v408 = vpack.c.b16 %v335, %v334
    %v409 = vpack.c.b16 %v337, %v336
    %v410 = vpack.c.b16 %v339, %v338
    %v411 = vpack.c.b16 %v341, %v340
    %v412 = vpack.c.b16 %v343, %v342
    %v413 = vpack.c.b16 %v345, %v344
    %v414 = vpack.c.b16 %v347, %v346
    %v415 = vpack.c.b16 %v349, %v348
    %v416 = vpack.c.b16 %v351, %v350
    %v417 = vpack.c.b16 %v353, %v352
    %v418 = vpack.c.b16 %v355, %v354
    %v419 = vpack.c.b16 %v357, %v356
    %v420 = vpack.c.b16 %v359, %v358
    %v421 = vpack.c.b16 %v361, %v360
    %v422 = vpack.c.b16 %v363, %v362
    %v423 = vpack.c.b16 %v365, %v364
    %v424 = vpack.c.b16 %v367, %v366
    %v425 = vpack.c.b16 %v369, %v368
    %v426 = vpack.c.b16 %v371, %v370
    %v427 = vpack.c.b16 %v373, %v372
    %v428 = vpack.c.b16 %v375, %v374
    %v429 = vpack.c.b16 %v377, %v376
    %v430 = vpack.c.b16 %v379, %v378
    %v431 = vpack.c.b16 %v381, %v380
    %v432 = vpack.c.b16 %v383, %v382
    %v433 = vpack.c.b16 %v385, %v384
    %482 = vmatprep.subr.bf16.mxu0 0
    %483 = vmatpush1.bf16.msra.mxu0 %v393
    %484 = vmatprep.subr.bf16.mxu0 0
    %485 = vmatpush1.bf16.msra.mxu0 %v392
    %486 = vmatprep.subr.bf16.mxu0 0
    %487 = vmatpush1.bf16.msra.mxu0 %v391
    %488 = vmatprep.subr.bf16.mxu0 0
    %489 = vmatpush1.bf16.msra.mxu0 %v390
    %490 = vmatprep.subr.bf16.mxu0 0
    %491 = vmatpush1.bf16.msra.mxu0 %v389
    %492 = vmatprep.subr.bf16.mxu0 0
    %493 = vmatpush1.bf16.msra.mxu0 %v388
    %494 = vmatprep.subr.bf16.mxu0 0
    %495 = vmatpush1.bf16.msra.mxu0 %v387
    %496 = vmatprep.subr.bf16.mxu0 0
    %497 = vmatpush1.bf16.msra.mxu0 %v386
    %498 = vmatprep.subr.bf16.mxu0 0
    %499 = vmatpush2.bf16.msra.mxu0 %v401
    %500 = vmatprep.subr.bf16.mxu0 0
    %501 = vmatpush2.bf16.msra.mxu0 %v400
    %502 = vmatprep.subr.bf16.mxu0 0
    %503 = vmatpush2.bf16.msra.mxu0 %v399
    %504 = vmatprep.subr.bf16.mxu0 0
    %505 = vmatpush2.bf16.msra.mxu0 %v398
    %506 = vmatprep.subr.bf16.mxu0 0
    %507 = vmatpush2.bf16.msra.mxu0 %v397
    %508 = vmatprep.subr.bf16.mxu0 0
    %509 = vmatpush2.bf16.msra.mxu0 %v396
    %510 = vmatprep.subr.bf16.mxu0 0
    %511 = vmatpush2.bf16.msra.mxu0 %v395
    %512 = vmatprep.subr.bf16.mxu0 0
    %513 = vmatpush2.bf16.msra.mxu0 %v394
    %514 = vmatprep.mubr.bf16.mxu0 %v183
    %515 = vmatmul.mubr.bf16.gmra.mxu0 %v182
    %v516 = vpop.f32.mrf.mxu0
    %v517 = vadd.f32 0.0, %v516
    %v518 = vpop.f32.mrf.mxu0
    %v519 = vpop.f32.mrf.mxu0
    %v520 = vpop.f32.mrf.mxu0
    %521 = vdwg.mxu0
    %522 = vmatprep.subr.bf16.mxu0 0
    %523 = vmatpush1.bf16.msra.mxu0 %v409
    %524 = vmatprep.subr.bf16.mxu0 0
    %525 = vmatpush1.bf16.msra.mxu0 %v408
    %526 = vmatprep.subr.bf16.mxu0 0
    %527 = vmatpush1.bf16.msra.mxu0 %v407
    %528 = vmatprep.subr.bf16.mxu0 0
    %529 = vmatpush1.bf16.msra.mxu0 %v406
    %530 = vmatprep.subr.bf16.mxu0 0
    %531 = vmatpush1.bf16.msra.mxu0 %v405
    %532 = vmatprep.subr.bf16.mxu0 0
    %533 = vmatpush1.bf16.msra.mxu0 %v404
    %534 = vmatprep.subr.bf16.mxu0 0
    %535 = vmatpush1.bf16.msra.mxu0 %v403
    %536 = vmatprep.subr.bf16.mxu0 0
    %537 = vmatpush1.bf16.msra.mxu0 %v402
    %538 = vmatprep.subr.bf16.mxu0 0
    %539 = vmatpush2.bf16.msra.mxu0 %v417
    %540 = vmatprep.subr.bf16.mxu0 0
    %541 = vmatpush2.bf16.msra.mxu0 %v416
    %542 = vmatprep.subr.bf16.mxu0 0
    %543 = vmatpush2.bf16.msra.mxu0 %v415
    %544 = vmatprep.subr.bf16.mxu0 0
    %545 = vmatpush2.bf16.msra.mxu0 %v414
    %546 = vmatprep.subr.bf16.mxu0 0
    %547 = vmatpush2.bf16.msra.mxu0 %v413
    %548 = vmatprep.subr.bf16.mxu0 0
    %549 = vmatpush2.bf16.msra.mxu0 %v412
    %550 = vmatprep.subr.bf16.mxu0 0
    %551 = vmatpush2.bf16.msra.mxu0 %v411
    %552 = vmatprep.subr.bf16.mxu0 0
    %553 = vmatpush2.bf16.msra.mxu0 %v410
    %554 = vmatprep.mubr.bf16.mxu0 %v185
    %555 = vmatmul.mubr.bf16.gmra.mxu0 %v184
    %v556 = vpop.f32.mrf.mxu0
    %v557 = vadd.f32 %v517, %v556
    %v558 = vpop.f32.mrf.mxu0
    %v559 = vpop.f32.mrf.mxu0
    %v560 = vpop.f32.mrf.mxu0
    %561 = vdwg.mxu0
    %562 = vmatprep.subr.bf16.mxu0 0
    %563 = vmatpush1.bf16.msra.mxu0 %v425
    %564 = vmatprep.subr.bf16.mxu0 0
    %565 = vmatpush1.bf16.msra.mxu0 %v424
    %566 = vmatprep.subr.bf16.mxu0 0
    %567 = vmatpush1.bf16.msra.mxu0 %v423
    %568 = vmatprep.subr.bf16.mxu0 0
    %569 = vmatpush1.bf16.msra.mxu0 %v422
    %570 = vmatprep.subr.bf16.mxu0 0
    %571 = vmatpush1.bf16.msra.mxu0 %v421
    %572 = vmatprep.subr.bf16.mxu0 0
    %573 = vmatpush1.bf16.msra.mxu0 %v420
    %574 = vmatprep.subr.bf16.mxu0 0
    %575 = vmatpush1.bf16.msra.mxu0 %v419
    %576 = vmatprep.subr.bf16.mxu0 0
    %577 = vmatpush1.bf16.msra.mxu0 %v418
    %578 = vmatprep.subr.bf16.mxu0 0
    %579 = vmatpush2.bf16.msra.mxu0 %v433
    %580 = vmatprep.subr.bf16.mxu0 0
    %581 = vmatpush2.bf16.msra.mxu0 %v432
    %582 = vmatprep.subr.bf16.mxu0 0
    %583 = vmatpush2.bf16.msra.mxu0 %v431
    %584 = vmatprep.subr.bf16.mxu0 0
    %585 = vmatpush2.bf16.msra.mxu0 %v430
    %586 = vmatprep.subr.bf16.mxu0 0
    %587 = vmatpush2.bf16.msra.mxu0 %v429
    %588 = vmatprep.subr.bf16.mxu0 0
    %589 = vmatpush2.bf16.msra.mxu0 %v428
    %590 = vmatprep.subr.bf16.mxu0 0
    %591 = vmatpush2.bf16.msra.mxu0 %v427
    %592 = vmatprep.subr.bf16.mxu0 0
    %593 = vmatpush2.bf16.msra.mxu0 %v426
    %594 = vmatprep.mubr.bf16.mxu0 %v187
    %595 = vmatmul.mubr.bf16.gmra.mxu0 %v186
    %v596 = vpop.f32.mrf.mxu0
    %v597 = vadd.f32 %v557, %v596
    %v598 = vpop.f32.mrf.mxu0
    %v599 = vpop.f32.mrf.mxu0
    %v600 = vpop.f32.mrf.mxu0
    %601 = vdwg.mxu0
    %v602 = vadd.f32 %v73, %v597
    %603 = vst [vmem:[#allocation2] sm:$0xff] %v602
    %v604 = vld [vmem:[#allocation2 + $0x8] sm:$0xff]
    %v605 = vld [vmem:[%s1] sm:$0xff]
    %v606 = vld [vmem:[%s1 + $0x8] sm:$0xff]
    %v607 = vld [vmem:[%s1 + $0x10] sm:$0xff]
    %v608 = vld [vmem:[%s2] sm:$0xf]
    %v609 = vld [vmem:[%s2 + $0x4] sm:$0xf]
    %v610 = vld [vmem:[%s2 + $0x8] sm:$0xf]
    %v611 = vld [vmem:[%s2 + $0xc] sm:$0xf]
    %v612 = vld [vmem:[%s2 + $0x10] sm:$0xf]
    %v613 = vld [vmem:[%s2 + $0x14] sm:$0xf]
    %v614 = vld [vmem:[%s2 + $0x18] sm:$0xf]
    %v615 = vld [vmem:[%s2 + $0x1c] sm:$0xf]
    %v616 = vld [vmem:[%s2 + $0x20] sm:$0xf]
    %v617 = vld [vmem:[%s2 + $0x24] sm:$0xf]
    %v618 = vld [vmem:[%s2 + $0x28] sm:$0xf]
    %v619 = vld [vmem:[%s2 + $0x2c] sm:$0xf]
    %v620 = vld [vmem:[%s2 + $0x30] sm:$0xf]
    %v621 = vld [vmem:[%s2 + $0x34] sm:$0xf]
    %v622 = vld [vmem:[%s2 + $0x38] sm:$0xf]
    %v623 = vld [vmem:[%s2 + $0x3c] sm:$0xf]
    %v624 = vld [vmem:[%s2 + $0x40] sm:$0xf]
    %v625 = vld [vmem:[%s2 + $0x44] sm:$0xf]
    %v626 = vld [vmem:[%s2 + $0x48] sm:$0xf]
    %v627 = vld [vmem:[%s2 + $0x4c] sm:$0xf]
    %v628 = vld [vmem:[%s2 + $0x50] sm:$0xf]
    %v629 = vld [vmem:[%s2 + $0x54] sm:$0xf]
    %v630 = vld [vmem:[%s2 + $0x58] sm:$0xf]
    %v631 = vld [vmem:[%s2 + $0x5c] sm:$0xf]
    %v632 = vld [vmem:[%s2 + $0x60] sm:$0xf]
    %v633 = vld [vmem:[%s2 + $0x64] sm:$0xf]
    %v634 = vld [vmem:[%s2 + $0x68] sm:$0xf]
    %v635 = vld [vmem:[%s2 + $0x6c] sm:$0xf]
    %v636 = vld [vmem:[%s2 + $0x70] sm:$0xf]
    %v637 = vld [vmem:[%s2 + $0x74] sm:$0xf]
    %v638 = vld [vmem:[%s2 + $0x78] sm:$0xf]
    %v639 = vld [vmem:[%s2 + $0x7c] sm:$0xf]
    %v640 = vld [vmem:[%s2 + $0x80] sm:$0xf]
    %v641 = vld [vmem:[%s2 + $0x84] sm:$0xf]
    %v642 = vld [vmem:[%s2 + $0x88] sm:$0xf]
    %v643 = vld [vmem:[%s2 + $0x8c] sm:$0xf]
    %v644 = vld [vmem:[%s2 + $0x90] sm:$0xf]
    %v645 = vld [vmem:[%s2 + $0x94] sm:$0xf]
    %v646 = vld [vmem:[%s2 + $0x98] sm:$0xf]
    %v647 = vld [vmem:[%s2 + $0x9c] sm:$0xf]
    %v648 = vld [vmem:[%s2 + $0xa0] sm:$0xf]
    %v649 = vld [vmem:[%s2 + $0xa4] sm:$0xf]
    %v650 = vld [vmem:[%s2 + $0xa8] sm:$0xf]
    %v651 = vld [vmem:[%s2 + $0xac] sm:$0xf]
    %v652 = vld [vmem:[%s2 + $0xb0] sm:$0xf]
    %v653 = vld [vmem:[%s2 + $0xb4] sm:$0xf]
    %v654 = vld [vmem:[%s2 + $0xb8] sm:$0xf]
    %v655 = vld [vmem:[%s2 + $0xbc] sm:$0xf]
    %v656 = vld [vmem:[%s2 + $0xc0] sm:$0xf]
    %v657 = vld [vmem:[%s2 + $0xc4] sm:$0xf]
    %v658 = vld [vmem:[%s2 + $0xc8] sm:$0xf]
    %v659 = vld [vmem:[%s2 + $0xcc] sm:$0xf]
    %v660 = vld [vmem:[%s2 + $0xd0] sm:$0xf]
    %v661 = vld [vmem:[%s2 + $0xd4] sm:$0xf]
    %v662 = vld [vmem:[%s2 + $0xd8] sm:$0xf]
    %v663 = vld [vmem:[%s2 + $0xdc] sm:$0xf]
    %v664 = vld [vmem:[%s2 + $0xe0] sm:$0xf]
    %v665 = vld [vmem:[%s2 + $0xe4] sm:$0xf]
    %v666 = vld [vmem:[%s2 + $0xe8] sm:$0xf]
    %v667 = vld [vmem:[%s2 + $0xec] sm:$0xf]
    %v668 = vld [vmem:[%s2 + $0xf0] sm:$0xf]
    %v669 = vld [vmem:[%s2 + $0xf4] sm:$0xf]
    %v670 = vld [vmem:[%s2 + $0xf8] sm:$0xf]
    %v671 = vld [vmem:[%s2 + $0xfc] sm:$0xf]
    %v672 = vld [vmem:[%s2 + $0x100] sm:$0xf]
    %v673 = vld [vmem:[%s2 + $0x104] sm:$0xf]
    %v674 = vld [vmem:[%s2 + $0x108] sm:$0xf]
    %v675 = vld [vmem:[%s2 + $0x10c] sm:$0xf]
    %v676 = vld [vmem:[%s2 + $0x110] sm:$0xf]
    %v677 = vld [vmem:[%s2 + $0x114] sm:$0xf]
    %v678 = vld [vmem:[%s2 + $0x118] sm:$0xf]
    %v679 = vld [vmem:[%s2 + $0x11c] sm:$0xf]
    %v680 = vld [vmem:[%s2 + $0x120] sm:$0xf]
    %v681 = vld [vmem:[%s2 + $0x124] sm:$0xf]
    %v682 = vld [vmem:[%s2 + $0x128] sm:$0xf]
    %v683 = vld [vmem:[%s2 + $0x12c] sm:$0xf]
    %v684 = vld [vmem:[%s2 + $0x130] sm:$0xf]
    %v685 = vld [vmem:[%s2 + $0x134] sm:$0xf]
    %v686 = vld [vmem:[%s2 + $0x138] sm:$0xf]
    %v687 = vld [vmem:[%s2 + $0x13c] sm:$0xf]
    %v688 = vld [vmem:[%s2 + $0x140] sm:$0xf]
    %v689 = vld [vmem:[%s2 + $0x144] sm:$0xf]
    %v690 = vld [vmem:[%s2 + $0x148] sm:$0xf]
    %v691 = vld [vmem:[%s2 + $0x14c] sm:$0xf]
    %v692 = vld [vmem:[%s2 + $0x150] sm:$0xf]
    %v693 = vld [vmem:[%s2 + $0x154] sm:$0xf]
    %v694 = vld [vmem:[%s2 + $0x158] sm:$0xf]
    %v695 = vld [vmem:[%s2 + $0x15c] sm:$0xf]
    %v696 = vld [vmem:[%s2 + $0x160] sm:$0xf]
    %v697 = vld [vmem:[%s2 + $0x164] sm:$0xf]
    %v698 = vld [vmem:[%s2 + $0x168] sm:$0xf]
    %v699 = vld [vmem:[%s2 + $0x16c] sm:$0xf]
    %v700 = vld [vmem:[%s2 + $0x170] sm:$0xf]
    %v701 = vld [vmem:[%s2 + $0x174] sm:$0xf]
    %v702 = vld [vmem:[%s2 + $0x178] sm:$0xf]
    %v703 = vld [vmem:[%s2 + $0x17c] sm:$0xf]
    %v707 = vunpack.c.l.b16 %v605
    %v708 = vunpack.c.h.b16 %v605
    %v709 = vunpack.c.l.b16 %v606
    %v710 = vunpack.c.h.b16 %v606
    %v711 = vunpack.c.l.b16 %v607
    %v712 = vunpack.c.h.b16 %v607
    %v713 = vpack.c.b16 %v707, %v707
    %v714 = vpack.c.b16 %v708, %v708
    %v715 = vpack.c.b16 %v709, %v709
    %v716 = vpack.c.b16 %v710, %v710
    %v717 = vpack.c.b16 %v711, %v711
    %v718 = vpack.c.b16 %v712, %v712
    %v821 = vunpack.c.l.b16 %v608
    %v822 = vunpack.c.l.b16 %v609
    %v823 = vunpack.c.l.b16 %v610
    %v824 = vunpack.c.l.b16 %v611
    %v825 = vunpack.c.l.b16 %v612
    %v826 = vunpack.c.l.b16 %v613
    %v827 = vunpack.c.l.b16 %v614
    %v828 = vunpack.c.l.b16 %v615
    %v829 = vunpack.c.l.b16 %v616
    %v830 = vunpack.c.l.b16 %v617
    %v831 = vunpack.c.l.b16 %v618
    %v832 = vunpack.c.l.b16 %v619
    %v833 = vunpack.c.l.b16 %v620
    %v834 = vunpack.c.l.b16 %v621
    %v835 = vunpack.c.l.b16 %v622
    %v836 = vunpack.c.l.b16 %v623
    %v837 = vunpack.c.l.b16 %v624
    %v838 = vunpack.c.l.b16 %v625
    %v839 = vunpack.c.l.b16 %v626
    %v840 = vunpack.c.l.b16 %v627
    %v841 = vunpack.c.l.b16 %v628
    %v842 = vunpack.c.l.b16 %v629
    %v843 = vunpack.c.l.b16 %v630
    %v844 = vunpack.c.l.b16 %v631
    %v845 = vunpack.c.l.b16 %v632
    %v846 = vunpack.c.l.b16 %v633
    %v847 = vunpack.c.l.b16 %v634
    %v848 = vunpack.c.l.b16 %v635
    %v849 = vunpack.c.l.b16 %v636
    %v850 = vunpack.c.l.b16 %v637
    %v851 = vunpack.c.l.b16 %v638
    %v852 = vunpack.c.l.b16 %v639
    %v853 = vunpack.c.l.b16 %v640
    %v854 = vunpack.c.l.b16 %v641
    %v855 = vunpack.c.l.b16 %v642
    %v856 = vunpack.c.l.b16 %v643
    %v857 = vunpack.c.l.b16 %v644
    %v858 = vunpack.c.l.b16 %v645
    %v859 = vunpack.c.l.b16 %v646
    %v860 = vunpack.c.l.b16 %v647
    %v861 = vunpack.c.l.b16 %v648
    %v862 = vunpack.c.l.b16 %v649
    %v863 = vunpack.c.l.b16 %v650
    %v864 = vunpack.c.l.b16 %v651
    %v865 = vunpack.c.l.b16 %v652
    %v866 = vunpack.c.l.b16 %v653
    %v867 = vunpack.c.l.b16 %v654
    %v868 = vunpack.c.l.b16 %v655
    %v869 = vunpack.c.l.b16 %v656
    %v870 = vunpack.c.l.b16 %v657
    %v871 = vunpack.c.l.b16 %v658
    %v872 = vunpack.c.l.b16 %v659
    %v873 = vunpack.c.l.b16 %v660
    %v874 = vunpack.c.l.b16 %v661
    %v875 = vunpack.c.l.b16 %v662
    %v876 = vunpack.c.l.b16 %v663
    %v877 = vunpack.c.l.b16 %v664
    %v878 = vunpack.c.l.b16 %v665
    %v879 = vunpack.c.l.b16 %v666
    %v880 = vunpack.c.l.b16 %v667
    %v881 = vunpack.c.l.b16 %v668
    %v882 = vunpack.c.l.b16 %v669
    %v883 = vunpack.c.l.b16 %v670
    %v884 = vunpack.c.l.b16 %v671
    %v885 = vunpack.c.l.b16 %v672
    %v886 = vunpack.c.l.b16 %v673
    %v887 = vunpack.c.l.b16 %v674
    %v888 = vunpack.c.l.b16 %v675
    %v889 = vunpack.c.l.b16 %v676
    %v890 = vunpack.c.l.b16 %v677
    %v891 = vunpack.c.l.b16 %v678
    %v892 = vunpack.c.l.b16 %v679
    %v893 = vunpack.c.l.b16 %v680
    %v894 = vunpack.c.l.b16 %v681
    %v895 = vunpack.c.l.b16 %v682
    %v896 = vunpack.c.l.b16 %v683
    %v897 = vunpack.c.l.b16 %v684
    %v898 = vunpack.c.l.b16 %v685
    %v899 = vunpack.c.l.b16 %v686
    %v900 = vunpack.c.l.b16 %v687
    %v901 = vunpack.c.l.b16 %v688
    %v902 = vunpack.c.l.b16 %v689
    %v903 = vunpack.c.l.b16 %v690
    %v904 = vunpack.c.l.b16 %v691
    %v905 = vunpack.c.l.b16 %v692
    %v906 = vunpack.c.l.b16 %v693
    %v907 = vunpack.c.l.b16 %v694
    %v908 = vunpack.c.l.b16 %v695
    %v909 = vunpack.c.l.b16 %v696
    %v910 = vunpack.c.l.b16 %v697
    %v911 = vunpack.c.l.b16 %v698
    %v912 = vunpack.c.l.b16 %v699
    %v913 = vunpack.c.l.b16 %v700
    %v914 = vunpack.c.l.b16 %v701
    %v915 = vunpack.c.l.b16 %v702
    %v916 = vunpack.c.l.b16 %v703
    %v917 = vpack.c.b16 %v822, %v821
    %v918 = vpack.c.b16 %v824, %v823
    %v919 = vpack.c.b16 %v826, %v825
    %v920 = vpack.c.b16 %v828, %v827
    %v921 = vpack.c.b16 %v830, %v829
    %v922 = vpack.c.b16 %v832, %v831
    %v923 = vpack.c.b16 %v834, %v833
    %v924 = vpack.c.b16 %v836, %v835
    %v925 = vpack.c.b16 %v838, %v837
    %v926 = vpack.c.b16 %v840, %v839
    %v927 = vpack.c.b16 %v842, %v841
    %v928 = vpack.c.b16 %v844, %v843
    %v929 = vpack.c.b16 %v846, %v845
    %v930 = vpack.c.b16 %v848, %v847
    %v931 = vpack.c.b16 %v850, %v849
    %v932 = vpack.c.b16 %v852, %v851
    %v933 = vpack.c.b16 %v854, %v853
    %v934 = vpack.c.b16 %v856, %v855
    %v935 = vpack.c.b16 %v858, %v857
    %v936 = vpack.c.b16 %v860, %v859
    %v937 = vpack.c.b16 %v862, %v861
    %v938 = vpack.c.b16 %v864, %v863
    %v939 = vpack.c.b16 %v866, %v865
    %v940 = vpack.c.b16 %v868, %v867
    %v941 = vpack.c.b16 %v870, %v869
    %v942 = vpack.c.b16 %v872, %v871
    %v943 = vpack.c.b16 %v874, %v873
    %v944 = vpack.c.b16 %v876, %v875
    %v945 = vpack.c.b16 %v878, %v877
    %v946 = vpack.c.b16 %v880, %v879
    %v947 = vpack.c.b16 %v882, %v881
    %v948 = vpack.c.b16 %v884, %v883
    %v949 = vpack.c.b16 %v886, %v885
    %v950 = vpack.c.b16 %v888, %v887
    %v951 = vpack.c.b16 %v890, %v889
    %v952 = vpack.c.b16 %v892, %v891
    %v953 = vpack.c.b16 %v894, %v893
    %v954 = vpack.c.b16 %v896, %v895
    %v955 = vpack.c.b16 %v898, %v897
    %v956 = vpack.c.b16 %v900, %v899
    %v957 = vpack.c.b16 %v902, %v901
    %v958 = vpack.c.b16 %v904, %v903
    %v959 = vpack.c.b16 %v906, %v905
    %v960 = vpack.c.b16 %v908, %v907
    %v961 = vpack.c.b16 %v910, %v909
    %v962 = vpack.c.b16 %v912, %v911
    %v963 = vpack.c.b16 %v914, %v913
    %v964 = vpack.c.b16 %v916, %v915
    %1013 = vmatprep.subr.bf16.mxu0 0
    %1014 = vmatpush1.bf16.msra.mxu0 %v924
    %1015 = vmatprep.subr.bf16.mxu0 0
    %1016 = vmatpush1.bf16.msra.mxu0 %v923
    %1017 = vmatprep.subr.bf16.mxu0 0
    %1018 = vmatpush1.bf16.msra.mxu0 %v922
    %1019 = vmatprep.subr.bf16.mxu0 0
    %1020 = vmatpush1.bf16.msra.mxu0 %v921
    %1021 = vmatprep.subr.bf16.mxu0 0
    %1022 = vmatpush1.bf16.msra.mxu0 %v920
    %1023 = vmatprep.subr.bf16.mxu0 0
    %1024 = vmatpush1.bf16.msra.mxu0 %v919
    %1025 = vmatprep.subr.bf16.mxu0 0
    %1026 = vmatpush1.bf16.msra.mxu0 %v918
    %1027 = vmatprep.subr.bf16.mxu0 0
    %1028 = vmatpush1.bf16.msra.mxu0 %v917
    %1029 = vmatprep.subr.bf16.mxu0 0
    %1030 = vmatpush2.bf16.msra.mxu0 %v932
    %1031 = vmatprep.subr.bf16.mxu0 0
    %1032 = vmatpush2.bf16.msra.mxu0 %v931
    %1033 = vmatprep.subr.bf16.mxu0 0
    %1034 = vmatpush2.bf16.msra.mxu0 %v930
    %1035 = vmatprep.subr.bf16.mxu0 0
    %1036 = vmatpush2.bf16.msra.mxu0 %v929
    %1037 = vmatprep.subr.bf16.mxu0 0
    %1038 = vmatpush2.bf16.msra.mxu0 %v928
    %1039 = vmatprep.subr.bf16.mxu0 0
    %1040 = vmatpush2.bf16.msra.mxu0 %v927
    %1041 = vmatprep.subr.bf16.mxu0 0
    %1042 = vmatpush2.bf16.msra.mxu0 %v926
    %1043 = vmatprep.subr.bf16.mxu0 0
    %1044 = vmatpush2.bf16.msra.mxu0 %v925
    %1045 = vmatprep.mubr.bf16.mxu0 %v714
    %1046 = vmatmul.mubr.bf16.gmra.mxu0 %v713
    %v1047 = vpop.f32.mrf.mxu0
    %v1048 = vadd.f32 0.0, %v1047
    %v1049 = vpop.f32.mrf.mxu0
    %v1050 = vpop.f32.mrf.mxu0
    %v1051 = vpop.f32.mrf.mxu0
    %1052 = vdwg.mxu0
    %1053 = vmatprep.subr.bf16.mxu0 0
    %1054 = vmatpush1.bf16.msra.mxu0 %v940
    %1055 = vmatprep.subr.bf16.mxu0 0
    %1056 = vmatpush1.bf16.msra.mxu0 %v939
    %1057 = vmatprep.subr.bf16.mxu0 0
    %1058 = vmatpush1.bf16.msra.mxu0 %v938
    %1059 = vmatprep.subr.bf16.mxu0 0
    %1060 = vmatpush1.bf16.msra.mxu0 %v937
    %1061 = vmatprep.subr.bf16.mxu0 0
    %1062 = vmatpush1.bf16.msra.mxu0 %v936
    %1063 = vmatprep.subr.bf16.mxu0 0
    %1064 = vmatpush1.bf16.msra.mxu0 %v935
    %1065 = vmatprep.subr.bf16.mxu0 0
    %1066 = vmatpush1.bf16.msra.mxu0 %v934
    %1067 = vmatprep.subr.bf16.mxu0 0
    %1068 = vmatpush1.bf16.msra.mxu0 %v933
    %1069 = vmatprep.subr.bf16.mxu0 0
    %1070 = vmatpush2.bf16.msra.mxu0 %v948
    %1071 = vmatprep.subr.bf16.mxu0 0
    %1072 = vmatpush2.bf16.msra.mxu0 %v947
    %1073 = vmatprep.subr.bf16.mxu0 0
    %1074 = vmatpush2.bf16.msra.mxu0 %v946
    %1075 = vmatprep.subr.bf16.mxu0 0
    %1076 = vmatpush2.bf16.msra.mxu0 %v945
    %1077 = vmatprep.subr.bf16.mxu0 0
    %1078 = vmatpush2.bf16.msra.mxu0 %v944
    %1079 = vmatprep.subr.bf16.mxu0 0
    %1080 = vmatpush2.bf16.msra.mxu0 %v943
    %1081 = vmatprep.subr.bf16.mxu0 0
    %1082 = vmatpush2.bf16.msra.mxu0 %v942
    %1083 = vmatprep.subr.bf16.mxu0 0
    %1084 = vmatpush2.bf16.msra.mxu0 %v941
    %1085 = vmatprep.mubr.bf16.mxu0 %v716
    %1086 = vmatmul.mubr.bf16.gmra.mxu0 %v715
    %v1087 = vpop.f32.mrf.mxu0
    %v1088 = vadd.f32 %v1048, %v1087
    %v1089 = vpop.f32.mrf.mxu0
    %v1090 = vpop.f32.mrf.mxu0
    %v1091 = vpop.f32.mrf.mxu0
    %1092 = vdwg.mxu0
    %1093 = vmatprep.subr.bf16.mxu0 0
    %1094 = vmatpush1.bf16.msra.mxu0 %v956
    %1095 = vmatprep.subr.bf16.mxu0 0
    %1096 = vmatpush1.bf16.msra.mxu0 %v955
    %1097 = vmatprep.subr.bf16.mxu0 0
    %1098 = vmatpush1.bf16.msra.mxu0 %v954
    %1099 = vmatprep.subr.bf16.mxu0 0
    %1100 = vmatpush1.bf16.msra.mxu0 %v953
    %1101 = vmatprep.subr.bf16.mxu0 0
    %1102 = vmatpush1.bf16.msra.mxu0 %v952
    %1103 = vmatprep.subr.bf16.mxu0 0
    %1104 = vmatpush1.bf16.msra.mxu0 %v951
    %1105 = vmatprep.subr.bf16.mxu0 0
    %1106 = vmatpush1.bf16.msra.mxu0 %v950
    %1107 = vmatprep.subr.bf16.mxu0 0
    %1108 = vmatpush1.bf16.msra.mxu0 %v949
    %1109 = vmatprep.subr.bf16.mxu0 0
    %1110 = vmatpush2.bf16.msra.mxu0 %v964
    %1111 = vmatprep.subr.bf16.mxu0 0
    %1112 = vmatpush2.bf16.msra.mxu0 %v963
    %1113 = vmatprep.subr.bf16.mxu0 0
    %1114 = vmatpush2.bf16.msra.mxu0 %v962
    %1115 = vmatprep.subr.bf16.mxu0 0
    %1116 = vmatpush2.bf16.msra.mxu0 %v961
    %1117 = vmatprep.subr.bf16.mxu0 0
    %1118 = vmatpush2.bf16.msra.mxu0 %v960
    %1119 = vmatprep.subr.bf16.mxu0 0
    %1120 = vmatpush2.bf16.msra.mxu0 %v959
    %1121 = vmatprep.subr.bf16.mxu0 0
    %1122 = vmatpush2.bf16.msra.mxu0 %v958
    %1123 = vmatprep.subr.bf16.mxu0 0
    %1124 = vmatpush2.bf16.msra.mxu0 %v957
    %1125 = vmatprep.mubr.bf16.mxu0 %v718
    %1126 = vmatmul.mubr.bf16.gmra.mxu0 %v717
    %v1127 = vpop.f32.mrf.mxu0
    %v1128 = vadd.f32 %v1088, %v1127
    %v1129 = vpop.f32.mrf.mxu0
    %v1130 = vpop.f32.mrf.mxu0
    %v1131 = vpop.f32.mrf.mxu0
    %1132 = vdwg.mxu0
    %v1133 = vadd.f32 %v604, %v1128
    %1134 = vst [vmem:[#allocation2 + $0x8] sm:$0xff] %v1133
    // Predicated region
    $region54: #{_siamese_forward_padded.1} parent=1 // pred_check
      %p1135 = pneg %p67
    $region55: #{_siamese_forward_padded.1} parent=1 // pred_check_branch
      %1137 = sbr.rel (%p1135) target = $region57
    $region56: #{_siamese_forward_padded.1} parent=1 // pred_region
      %v1138 = vld [vmem:[%s3] sm:$0x1]
      %v1139 = vld [vmem:[#allocation2] sm:$0xff]
      %v1141 = vlaneseq
      %v1142 = vshrl.u32 %v1141, 7
      %v1143 = vsub.s32 0, %v1142
      %v1144 = vrot.slane %v1138, %v1143
      %v1146 = vadd.f32 %v1139, %v1144
      %v1147 = vpack.c.bf16 %v1146, %v1146
      %v1148 = vld [vmem:[#allocation2 + $0x8] sm:$0xff]
      %v1149 = vadd.f32 %v1148, %v1144
      %v1150 = vpack.c.bf16 %v1149, %v1149
      %v1151 = vld [vmem:[#allocation4] sm:$0xff]
      %v1152 = vld [vmem:[#allocation4 + $0x8] sm:$0xff]
      %v1153 = vld [vmem:[#allocation4 + $0x10] sm:$0xff]
      %v1154 = vld [vmem:[#allocation4 + $0x18] sm:$0xff]
      %v1155 = vld [vmem:[#allocation4 + $0x20] sm:$0xff]
      %v1156 = vld [vmem:[#allocation4 + $0x28] sm:$0xff]
      %v1157 = vld [vmem:[#allocation4 + $0x30] sm:$0xff]
      %v1158 = vld [vmem:[#allocation4 + $0x38] sm:$0xff]
      %v1159 = vld [vmem:[#allocation4 + $0x40] sm:$0xff]
      %v1160 = vld [vmem:[#allocation4 + $0x48] sm:$0xff]
      %v1161 = vld [vmem:[#allocation4 + $0x50] sm:$0xff]
      %v1162 = vld [vmem:[#allocation4 + $0x58] sm:$0xff]
      %v1163 = vld [vmem:[#allocation4 + $0x60] sm:$0xff]
      %v1164 = vld [vmem:[#allocation4 + $0x68] sm:$0xff]
      %v1165 = vld [vmem:[#allocation4 + $0x70] sm:$0xff]
      %v1166 = vld [vmem:[#allocation4 + $0x78] sm:$0xff]
      %v1167 = vld [vmem:[#allocation4 + $0x80] sm:$0xff]
      %v1168 = vld [vmem:[#allocation4 + $0x88] sm:$0xff]
      %v1169 = vld [vmem:[#allocation4 + $0x90] sm:$0xff]
      %v1170 = vld [vmem:[#allocation4 + $0x98] sm:$0xff]
      %v1171 = vld [vmem:[#allocation4 + $0xa0] sm:$0xff]
      %v1172 = vld [vmem:[#allocation4 + $0xa8] sm:$0xff]
      %v1173 = vld [vmem:[#allocation4 + $0xb0] sm:$0xff]
      %v1174 = vld [vmem:[#allocation4 + $0xb8] sm:$0xff]
      %v1175 = vld [vmem:[#allocation4 + $0xc0] sm:$0xff]
      %v1176 = vld [vmem:[#allocation4 + $0xc8] sm:$0xff]
      %v1177 = vld [vmem:[#allocation4 + $0xd0] sm:$0xff]
      %v1178 = vld [vmem:[#allocation4 + $0xd8] sm:$0xff]
      %v1179 = vld [vmem:[#allocation4 + $0xe0] sm:$0xff]
      %v1180 = vld [vmem:[#allocation4 + $0xe8] sm:$0xff]
      %v1181 = vld [vmem:[#allocation4 + $0xf0] sm:$0xff]
      %v1182 = vld [vmem:[#allocation4 + $0xf8] sm:$0xff]
      %v1183 = vld [vmem:[#allocation4 + $0x100] sm:$0xff]
      %v1184 = vld [vmem:[#allocation4 + $0x108] sm:$0xff]
      %v1185 = vld [vmem:[#allocation4 + $0x110] sm:$0xff]
      %v1186 = vld [vmem:[#allocation4 + $0x118] sm:$0xff]
      %v1187 = vld [vmem:[#allocation4 + $0x120] sm:$0xff]
      %v1188 = vld [vmem:[#allocation4 + $0x128] sm:$0xff]
      %v1189 = vld [vmem:[#allocation4 + $0x130] sm:$0xff]
      %v1190 = vld [vmem:[#allocation4 + $0x138] sm:$0xff]
      %v1191 = vld [vmem:[#allocation4 + $0x140] sm:$0xff]
      %v1192 = vld [vmem:[#allocation4 + $0x148] sm:$0xff]
      %v1193 = vld [vmem:[#allocation4 + $0x150] sm:$0xff]
      %v1194 = vld [vmem:[#allocation4 + $0x158] sm:$0xff]
      %v1195 = vld [vmem:[#allocation4 + $0x160] sm:$0xff]
      %v1196 = vld [vmem:[#allocation4 + $0x168] sm:$0xff]
      %v1197 = vld [vmem:[#allocation4 + $0x170] sm:$0xff]
      %v1198 = vld [vmem:[#allocation4 + $0x178] sm:$0xff]
      %v1199 = vld [vmem:[#allocation4 + $0x180] sm:$0xff]
      %v1200 = vld [vmem:[#allocation4 + $0x188] sm:$0xff]
      %v1201 = vld [vmem:[#allocation4 + $0x190] sm:$0xff]
      %v1202 = vld [vmem:[#allocation4 + $0x198] sm:$0xff]
      %v1203 = vld [vmem:[#allocation4 + $0x1a0] sm:$0xff]
      %v1204 = vld [vmem:[#allocation4 + $0x1a8] sm:$0xff]
      %v1205 = vld [vmem:[#allocation4 + $0x1b0] sm:$0xff]
      %v1206 = vld [vmem:[#allocation4 + $0x1b8] sm:$0xff]
      %v1207 = vld [vmem:[#allocation4 + $0x1c0] sm:$0xff]
      %v1208 = vld [vmem:[#allocation4 + $0x1c8] sm:$0xff]
      %v1209 = vld [vmem:[#allocation4 + $0x1d0] sm:$0xff]
      %v1210 = vld [vmem:[#allocation4 + $0x1d8] sm:$0xff]
      %v1211 = vld [vmem:[#allocation4 + $0x1e0] sm:$0xff]
      %v1212 = vld [vmem:[#allocation4 + $0x1e8] sm:$0xff]
      %v1213 = vld [vmem:[#allocation4 + $0x1f0] sm:$0xff]
      %v1214 = vld [vmem:[#allocation4 + $0x1f8] sm:$0xff]
      %v1247 = vunpack.c.l.b16 %v1183
      %v1248 = vunpack.c.h.b16 %v1183
      %v1249 = vunpack.c.l.b16 %v1184
      %v1250 = vunpack.c.h.b16 %v1184
      %v1251 = vunpack.c.l.b16 %v1185
      %v1252 = vunpack.c.h.b16 %v1185
      %v1253 = vunpack.c.l.b16 %v1186
      %v1254 = vunpack.c.h.b16 %v1186
      %v1255 = vunpack.c.l.b16 %v1187
      %v1256 = vunpack.c.h.b16 %v1187
      %v1257 = vunpack.c.l.b16 %v1188
      %v1258 = vunpack.c.h.b16 %v1188
      %v1259 = vunpack.c.l.b16 %v1189
      %v1260 = vunpack.c.h.b16 %v1189
      %v1261 = vunpack.c.l.b16 %v1190
      %v1262 = vunpack.c.h.b16 %v1190
      %v1263 = vunpack.c.l.b16 %v1191
      %v1264 = vunpack.c.h.b16 %v1191
      %v1265 = vunpack.c.l.b16 %v1192
      %v1266 = vunpack.c.h.b16 %v1192
      %v1267 = vunpack.c.l.b16 %v1193
      %v1268 = vunpack.c.h.b16 %v1193
      %v1269 = vunpack.c.l.b16 %v1194
      %v1270 = vunpack.c.h.b16 %v1194
      %v1271 = vunpack.c.l.b16 %v1195
      %v1272 = vunpack.c.h.b16 %v1195
      %v1273 = vunpack.c.l.b16 %v1196
      %v1274 = vunpack.c.h.b16 %v1196
      %v1275 = vunpack.c.l.b16 %v1197
      %v1276 = vunpack.c.h.b16 %v1197
      %v1277 = vunpack.c.l.b16 %v1198
      %v1278 = vunpack.c.h.b16 %v1198
      %v1279 = vunpack.c.l.b16 %v1199
      %v1280 = vunpack.c.h.b16 %v1199
      %v1281 = vunpack.c.l.b16 %v1200
      %v1282 = vunpack.c.h.b16 %v1200
      %v1283 = vunpack.c.l.b16 %v1201
      %v1284 = vunpack.c.h.b16 %v1201
      %v1285 = vunpack.c.l.b16 %v1202
      %v1286 = vunpack.c.h.b16 %v1202
      %v1287 = vunpack.c.l.b16 %v1203
      %v1288 = vunpack.c.h.b16 %v1203
      %v1289 = vunpack.c.l.b16 %v1204
      %v1290 = vunpack.c.h.b16 %v1204
      %v1291 = vunpack.c.l.b16 %v1205
      %v1292 = vunpack.c.h.b16 %v1205
      %v1293 = vunpack.c.l.b16 %v1206
      %v1294 = vunpack.c.h.b16 %v1206
      %v1295 = vunpack.c.l.b16 %v1207
      %v1296 = vunpack.c.h.b16 %v1207
      %v1297 = vunpack.c.l.b16 %v1208
      %v1298 = vunpack.c.h.b16 %v1208
      %v1299 = vunpack.c.l.b16 %v1209
      %v1300 = vunpack.c.h.b16 %v1209
      %v1301 = vunpack.c.l.b16 %v1210
      %v1302 = vunpack.c.h.b16 %v1210
      %v1303 = vunpack.c.l.b16 %v1211
      %v1304 = vunpack.c.h.b16 %v1211
      %v1305 = vunpack.c.l.b16 %v1212
      %v1306 = vunpack.c.h.b16 %v1212
      %v1307 = vunpack.c.l.b16 %v1213
      %v1308 = vunpack.c.h.b16 %v1213
      %v1309 = vunpack.c.l.b16 %v1214
      %v1310 = vunpack.c.h.b16 %v1214
      %v1311 = vpack.c.b16 %v1251, %v1247
      %v1312 = vpack.c.b16 %v1252, %v1248
      %v1313 = vpack.c.b16 %v1253, %v1249
      %v1314 = vpack.c.b16 %v1254, %v1250
      %v1315 = vpack.c.b16 %v1259, %v1255
      %v1316 = vpack.c.b16 %v1260, %v1256
      %v1317 = vpack.c.b16 %v1261, %v1257
      %v1318 = vpack.c.b16 %v1262, %v1258
      %v1319 = vpack.c.b16 %v1267, %v1263
      %v1320 = vpack.c.b16 %v1268, %v1264
      %v1321 = vpack.c.b16 %v1269, %v1265
      %v1322 = vpack.c.b16 %v1270, %v1266
      %v1323 = vpack.c.b16 %v1275, %v1271
      %v1324 = vpack.c.b16 %v1276, %v1272
      %v1325 = vpack.c.b16 %v1277, %v1273
      %v1326 = vpack.c.b16 %v1278, %v1274
      %v1327 = vpack.c.b16 %v1283, %v1279
      %v1328 = vpack.c.b16 %v1284, %v1280
      %v1329 = vpack.c.b16 %v1285, %v1281
      %v1330 = vpack.c.b16 %v1286, %v1282
      %v1331 = vpack.c.b16 %v1291, %v1287
      %v1332 = vpack.c.b16 %v1292, %v1288
      %v1333 = vpack.c.b16 %v1293, %v1289
      %v1334 = vpack.c.b16 %v1294, %v1290
      %v1335 = vpack.c.b16 %v1299, %v1295
      %v1336 = vpack.c.b16 %v1300, %v1296
      %v1337 = vpack.c.b16 %v1301, %v1297
      %v1338 = vpack.c.b16 %v1302, %v1298
      %v1339 = vpack.c.b16 %v1307, %v1303
      %v1340 = vpack.c.b16 %v1308, %v1304
      %v1341 = vpack.c.b16 %v1309, %v1305
      %v1342 = vpack.c.b16 %v1310, %v1306
      %1375 = vmatprep.subr.bf16.mxu0 %v1340
      %1376 = vmatpush1.bf16.msra.mxu0 %v1339
      %1377 = vmatprep.subr.bf16.mxu0 %v1336
      %1378 = vmatpush1.bf16.msra.mxu0 %v1335
      %1379 = vmatprep.subr.bf16.mxu0 %v1332
      %1380 = vmatpush1.bf16.msra.mxu0 %v1331
      %1381 = vmatprep.subr.bf16.mxu0 %v1328
      %1382 = vmatpush1.bf16.msra.mxu0 %v1327
      %1383 = vmatprep.subr.bf16.mxu0 %v1324
      %1384 = vmatpush1.bf16.msra.mxu0 %v1323
      %1385 = vmatprep.subr.bf16.mxu0 %v1320
      %1386 = vmatpush1.bf16.msra.mxu0 %v1319
      %1387 = vmatprep.subr.bf16.mxu0 %v1316
      %1388 = vmatpush1.bf16.msra.mxu0 %v1315
      %1389 = vmatprep.subr.bf16.mxu0 %v1312
      %1390 = vmatpush1.bf16.msra.mxu0 %v1311
      %1391 = vmatprep.subr.bf16.mxu0 0
      %1392 = vmatpush2.bf16.msra.mxu0 0
      %1393 = vmatprep.subr.bf16.mxu0 0
      %1394 = vmatpush2.bf16.msra.mxu0 0
      %1395 = vmatprep.subr.bf16.mxu0 0
      %1396 = vmatpush2.bf16.msra.mxu0 0
      %1397 = vmatprep.subr.bf16.mxu0 0
      %1398 = vmatpush2.bf16.msra.mxu0 0
      %1399 = vmatprep.subr.bf16.mxu0 0
      %1400 = vmatpush2.bf16.msra.mxu0 0
      %1401 = vmatprep.subr.bf16.mxu0 0
      %1402 = vmatpush2.bf16.msra.mxu0 0
      %1403 = vmatprep.subr.bf16.mxu0 0
      %1404 = vmatpush2.bf16.msra.mxu0 0
      %1405 = vmatprep.subr.bf16.mxu0 0
      %1406 = vmatpush2.bf16.msra.mxu0 0
      %1407 = vmatprep.mubr.bf16.mxu0 0
      %1408 = vmatmul.mubr.bf16.gmra.mxu0 %v1150
      %v1409 = vpop.f32.mrf.mxu0
      %v1410 = vadd.f32 0.0, %v1409
      %v1411 = vpop.f32.mrf.mxu0
      %v1412 = vadd.f32 0.0, %v1411
      %v1413 = vpop.f32.mrf.mxu0
      %v1414 = vpop.f32.mrf.mxu0
      %1415 = vdwg.mxu0
      %1416 = vmatprep.subr.bf16.mxu0 %v1342
      %1417 = vmatpush1.bf16.msra.mxu0 %v1341
      %1418 = vmatprep.subr.bf16.mxu0 %v1338
      %1419 = vmatpush1.bf16.msra.mxu0 %v1337
      %1420 = vmatprep.subr.bf16.mxu0 %v1334
      %1421 = vmatpush1.bf16.msra.mxu0 %v1333
      %1422 = vmatprep.subr.bf16.mxu0 %v1330
      %1423 = vmatpush1.bf16.msra.mxu0 %v1329
      %1424 = vmatprep.subr.bf16.mxu0 %v1326
      %1425 = vmatpush1.bf16.msra.mxu0 %v1325
      %1426 = vmatprep.subr.bf16.mxu0 %v1322
      %1427 = vmatpush1.bf16.msra.mxu0 %v1321
      %1428 = vmatprep.subr.bf16.mxu0 %v1318
      %1429 = vmatpush1.bf16.msra.mxu0 %v1317
      %1430 = vmatprep.subr.bf16.mxu0 %v1314
      %1431 = vmatpush1.bf16.msra.mxu0 %v1313
      %1432 = vmatprep.subr.bf16.mxu0 0
      %1433 = vmatpush2.bf16.msra.mxu0 0
      %1434 = vmatprep.subr.bf16.mxu0 0
      %1435 = vmatpush2.bf16.msra.mxu0 0
      %1436 = vmatprep.subr.bf16.mxu0 0
      %1437 = vmatpush2.bf16.msra.mxu0 0
      %1438 = vmatprep.subr.bf16.mxu0 0
      %1439 = vmatpush2.bf16.msra.mxu0 0
      %1440 = vmatprep.subr.bf16.mxu0 0
      %1441 = vmatpush2.bf16.msra.mxu0 0
      %1442 = vmatprep.subr.bf16.mxu0 0
      %1443 = vmatpush2.bf16.msra.mxu0 0
      %1444 = vmatprep.subr.bf16.mxu0 0
      %1445 = vmatpush2.bf16.msra.mxu0 0
      %1446 = vmatprep.subr.bf16.mxu0 0
      %1447 = vmatpush2.bf16.msra.mxu0 0
      %1448 = vmatprep.mubr.bf16.mxu0 0
      %1449 = vmatmul.mubr.bf16.gmra.mxu0 %v1150
      %v1450 = vpop.f32.mrf.mxu0
      %v1451 = vadd.f32 0.0, %v1450
      %v1452 = vpop.f32.mrf.mxu0
      %v1453 = vadd.f32 0.0, %v1452
      %v1454 = vpop.f32.mrf.mxu0
      %v1455 = vpop.f32.mrf.mxu0
      %1456 = vdwg.mxu0
      %v1489 = vunpack.c.l.b16 %v1151
      %v1490 = vunpack.c.h.b16 %v1151
      %v1491 = vunpack.c.l.b16 %v1152
      %v1492 = vunpack.c.h.b16 %v1152
      %v1493 = vunpack.c.l.b16 %v1153
      %v1494 = vunpack.c.h.b16 %v1153
      %v1495 = vunpack.c.l.b16 %v1154
      %v1496 = vunpack.c.h.b16 %v1154
      %v1497 = vunpack.c.l.b16 %v1155
      %v1498 = vunpack.c.h.b16 %v1155
      %v1499 = vunpack.c.l.b16 %v1156
      %v1500 = vunpack.c.h.b16 %v1156
      %v1501 = vunpack.c.l.b16 %v1157
      %v1502 = vunpack.c.h.b16 %v1157
      %v1503 = vunpack.c.l.b16 %v1158
      %v1504 = vunpack.c.h.b16 %v1158
      %v1505 = vunpack.c.l.b16 %v1159
      %v1506 = vunpack.c.h.b16 %v1159
      %v1507 = vunpack.c.l.b16 %v1160
      %v1508 = vunpack.c.h.b16 %v1160
      %v1509 = vunpack.c.l.b16 %v1161
      %v1510 = vunpack.c.h.b16 %v1161
      %v1511 = vunpack.c.l.b16 %v1162
      %v1512 = vunpack.c.h.b16 %v1162
      %v1513 = vunpack.c.l.b16 %v1163
      %v1514 = vunpack.c.h.b16 %v1163
      %v1515 = vunpack.c.l.b16 %v1164
      %v1516 = vunpack.c.h.b16 %v1164
      %v1517 = vunpack.c.l.b16 %v1165
      %v1518 = vunpack.c.h.b16 %v1165
      %v1519 = vunpack.c.l.b16 %v1166
      %v1520 = vunpack.c.h.b16 %v1166
      %v1521 = vunpack.c.l.b16 %v1167
      %v1522 = vunpack.c.h.b16 %v1167
      %v1523 = vunpack.c.l.b16 %v1168
      %v1524 = vunpack.c.h.b16 %v1168
      %v1525 = vunpack.c.l.b16 %v1169
      %v1526 = vunpack.c.h.b16 %v1169
      %v1527 = vunpack.c.l.b16 %v1170
      %v1528 = vunpack.c.h.b16 %v1170
      %v1529 = vunpack.c.l.b16 %v1171
      %v1530 = vunpack.c.h.b16 %v1171
      %v1531 = vunpack.c.l.b16 %v1172
      %v1532 = vunpack.c.h.b16 %v1172
      %v1533 = vunpack.c.l.b16 %v1173
      %v1534 = vunpack.c.h.b16 %v1173
      %v1535 = vunpack.c.l.b16 %v1174
      %v1536 = vunpack.c.h.b16 %v1174
      %v1537 = vunpack.c.l.b16 %v1175
      %v1538 = vunpack.c.h.b16 %v1175
      %v1539 = vunpack.c.l.b16 %v1176
      %v1540 = vunpack.c.h.b16 %v1176
      %v1541 = vunpack.c.l.b16 %v1177
      %v1542 = vunpack.c.h.b16 %v1177
      %v1543 = vunpack.c.l.b16 %v1178
      %v1544 = vunpack.c.h.b16 %v1178
      %v1545 = vunpack.c.l.b16 %v1179
      %v1546 = vunpack.c.h.b16 %v1179
      %v1547 = vunpack.c.l.b16 %v1180
      %v1548 = vunpack.c.h.b16 %v1180
      %v1549 = vunpack.c.l.b16 %v1181
      %v1550 = vunpack.c.h.b16 %v1181
      %v1551 = vunpack.c.l.b16 %v1182
      %v1552 = vunpack.c.h.b16 %v1182
      %v1553 = vpack.c.b16 %v1493, %v1489
      %v1554 = vpack.c.b16 %v1494, %v1490
      %v1555 = vpack.c.b16 %v1495, %v1491
      %v1556 = vpack.c.b16 %v1496, %v1492
      %v1557 = vpack.c.b16 %v1501, %v1497
      %v1558 = vpack.c.b16 %v1502, %v1498
      %v1559 = vpack.c.b16 %v1503, %v1499
      %v1560 = vpack.c.b16 %v1504, %v1500
      %v1561 = vpack.c.b16 %v1509, %v1505
      %v1562 = vpack.c.b16 %v1510, %v1506
      %v1563 = vpack.c.b16 %v1511, %v1507
      %v1564 = vpack.c.b16 %v1512, %v1508
      %v1565 = vpack.c.b16 %v1517, %v1513
      %v1566 = vpack.c.b16 %v1518, %v1514
      %v1567 = vpack.c.b16 %v1519, %v1515
      %v1568 = vpack.c.b16 %v1520, %v1516
      %v1569 = vpack.c.b16 %v1525, %v1521
      %v1570 = vpack.c.b16 %v1526, %v1522
      %v1571 = vpack.c.b16 %v1527, %v1523
      %v1572 = vpack.c.b16 %v1528, %v1524
      %v1573 = vpack.c.b16 %v1533, %v1529
      %v1574 = vpack.c.b16 %v1534, %v1530
      %v1575 = vpack.c.b16 %v1535, %v1531
      %v1576 = vpack.c.b16 %v1536, %v1532
      %v1577 = vpack.c.b16 %v1541, %v1537
      %v1578 = vpack.c.b16 %v1542, %v1538
      %v1579 = vpack.c.b16 %v1543, %v1539
      %v1580 = vpack.c.b16 %v1544, %v1540
      %v1581 = vpack.c.b16 %v1549, %v1545
      %v1582 = vpack.c.b16 %v1550, %v1546
      %v1583 = vpack.c.b16 %v1551, %v1547
      %v1584 = vpack.c.b16 %v1552, %v1548
      %1617 = vmatprep.subr.bf16.mxu0 %v1582
      %1618 = vmatpush1.bf16.msra.mxu0 %v1581
      %1619 = vmatprep.subr.bf16.mxu0 %v1578
      %1620 = vmatpush1.bf16.msra.mxu0 %v1577
      %1621 = vmatprep.subr.bf16.mxu0 %v1574
      %1622 = vmatpush1.bf16.msra.mxu0 %v1573
      %1623 = vmatprep.subr.bf16.mxu0 %v1570
      %1624 = vmatpush1.bf16.msra.mxu0 %v1569
      %1625 = vmatprep.subr.bf16.mxu0 %v1566
      %1626 = vmatpush1.bf16.msra.mxu0 %v1565
      %1627 = vmatprep.subr.bf16.mxu0 %v1562
      %1628 = vmatpush1.bf16.msra.mxu0 %v1561
      %1629 = vmatprep.subr.bf16.mxu0 %v1558
      %1630 = vmatpush1.bf16.msra.mxu0 %v1557
      %1631 = vmatprep.subr.bf16.mxu0 %v1554
      %1632 = vmatpush1.bf16.msra.mxu0 %v1553
      %1633 = vmatprep.subr.bf16.mxu0 0
      %1634 = vmatpush2.bf16.msra.mxu0 0
      %1635 = vmatprep.subr.bf16.mxu0 0
      %1636 = vmatpush2.bf16.msra.mxu0 0
      %1637 = vmatprep.subr.bf16.mxu0 0
      %1638 = vmatpush2.bf16.msra.mxu0 0
      %1639 = vmatprep.subr.bf16.mxu0 0
      %1640 = vmatpush2.bf16.msra.mxu0 0
      %1641 = vmatprep.subr.bf16.mxu0 0
      %1642 = vmatpush2.bf16.msra.mxu0 0
      %1643 = vmatprep.subr.bf16.mxu0 0
      %1644 = vmatpush2.bf16.msra.mxu0 0
      %1645 = vmatprep.subr.bf16.mxu0 0
      %1646 = vmatpush2.bf16.msra.mxu0 0
      %1647 = vmatprep.subr.bf16.mxu0 0
      %1648 = vmatpush2.bf16.msra.mxu0 0
      %1649 = vmatprep.mubr.bf16.mxu0 0
      %1650 = vmatmul.mubr.bf16.gmra.mxu0 %v1147
      %v1651 = vpop.f32.mrf.mxu0
      %v1652 = vadd.f32 %v1410, %v1651
      %v1653 = vpop.f32.mrf.mxu0
      %v1654 = vadd.f32 %v1412, %v1653
      %v1655 = vpop.f32.mrf.mxu0
      %v1656 = vpop.f32.mrf.mxu0
      %1657 = vdwg.mxu0
      %1658 = vmatprep.subr.bf16.mxu0 %v1584
      %1659 = vmatpush1.bf16.msra.mxu0 %v1583
      %1660 = vmatprep.subr.bf16.mxu0 %v1580
      %1661 = vmatpush1.bf16.msra.mxu0 %v1579
      %1662 = vmatprep.subr.bf16.mxu0 %v1576
      %1663 = vmatpush1.bf16.msra.mxu0 %v1575
      %1664 = vmatprep.subr.bf16.mxu0 %v1572
      %1665 = vmatpush1.bf16.msra.mxu0 %v1571
      %1666 = vmatprep.subr.bf16.mxu0 %v1568
      %1667 = vmatpush1.bf16.msra.mxu0 %v1567
      %1668 = vmatprep.subr.bf16.mxu0 %v1564
      %1669 = vmatpush1.bf16.msra.mxu0 %v1563
      %1670 = vmatprep.subr.bf16.mxu0 %v1560
      %1671 = vmatpush1.bf16.msra.mxu0 %v1559
      %1672 = vmatprep.subr.bf16.mxu0 %v1556
      %1673 = vmatpush1.bf16.msra.mxu0 %v1555
      %1674 = vmatprep.subr.bf16.mxu0 0
      %1675 = vmatpush2.bf16.msra.mxu0 0
      %1676 = vmatprep.subr.bf16.mxu0 0
      %1677 = vmatpush2.bf16.msra.mxu0 0
      %1678 = vmatprep.subr.bf16.mxu0 0
      %1679 = vmatpush2.bf16.msra.mxu0 0
      %1680 = vmatprep.subr.bf16.mxu0 0
      %1681 = vmatpush2.bf16.msra.mxu0 0
      %1682 = vmatprep.subr.bf16.mxu0 0
      %1683 = vmatpush2.bf16.msra.mxu0 0
      %1684 = vmatprep.subr.bf16.mxu0 0
      %1685 = vmatpush2.bf16.msra.mxu0 0
      %1686 = vmatprep.subr.bf16.mxu0 0
      %1687 = vmatpush2.bf16.msra.mxu0 0
      %1688 = vmatprep.subr.bf16.mxu0 0
      %1689 = vmatpush2.bf16.msra.mxu0 0
      %1690 = vmatprep.mubr.bf16.mxu0 0
      %1691 = vmatmul.mubr.bf16.gmra.mxu0 %v1147
      %v1692 = vpop.f32.mrf.mxu0
      %v1693 = vadd.f32 %v1451, %v1692
      %v1694 = vpop.f32.mrf.mxu0
      %v1695 = vadd.f32 %v1453, %v1694
      %v1696 = vpop.f32.mrf.mxu0
      %v1697 = vpop.f32.mrf.mxu0
      %1698 = vdwg.mxu0
      %v1699 = vld [vmem:[%s5] sm:$0xf]
      %v1701 = vlaneseq
      %v1702 = vshrl.u32 %v1701, 7
      %v1703 = vsub.s32 0, %v1702
      %v1704 = vrot.slane %v1699, %v1703
      %v1705 = vlaneseq
      %v1706 = vshrl.u32 %v1705, 7
      %v1707 = vsub.s32 1, %v1706
      %v1708 = vrot.slane %v1699, %v1707
      %v1709 = vlaneseq
      %v1710 = vshrl.u32 %v1709, 7
      %v1711 = vsub.s32 2, %v1710
      %v1712 = vrot.slane %v1699, %v1711
      %v1713 = vlaneseq
      %v1714 = vshrl.u32 %v1713, 7
      %v1715 = vsub.s32 3, %v1714
      %v1716 = vrot.slane %v1699, %v1715
      %v1721 = vadd.f32 %v1652, %v1704
      %v1722 = vadd.f32 %v1654, %v1708
      %v1723 = vadd.f32 %v1693, %v1712
      %v1724 = vadd.f32 %v1695, %v1716
      %v1725 = vmax.f32 %v1721, 0.0
      %v1726 = vmax.f32 %v1722, 0.0
      %v1727 = vmax.f32 %v1723, 0.0
      %v1728 = vmax.f32 %v1724, 0.0
      %v1729 = vpack.c.bf16 %v1725, %v1725
      %v1730 = vpack.c.bf16 %v1726, %v1726
      %v1731 = vpack.c.bf16 %v1727, %v1727
      %v1732 = vpack.c.bf16 %v1728, %v1728
      %v1733 = vld [vmem:[#allocation6] sm:$0xf]
      %v1734 = vld [vmem:[#allocation6 + $0x4] sm:$0xf]
      %v1735 = vld [vmem:[#allocation6 + $0x8] sm:$0xf]
      %v1736 = vld [vmem:[#allocation6 + $0xc] sm:$0xf]
      %v1737 = vld [vmem:[#allocation6 + $0x10] sm:$0xf]
      %v1738 = vld [vmem:[#allocation6 + $0x14] sm:$0xf]
      %v1739 = vld [vmem:[#allocation6 + $0x18] sm:$0xf]
      %v1740 = vld [vmem:[#allocation6 + $0x1c] sm:$0xf]
      %v1741 = vld [vmem:[#allocation6 + $0x20] sm:$0xf]
      %v1742 = vld [vmem:[#allocation6 + $0x24] sm:$0xf]
      %v1743 = vld [vmem:[#allocation6 + $0x28] sm:$0xf]
      %v1744 = vld [vmem:[#allocation6 + $0x2c] sm:$0xf]
      %v1745 = vld [vmem:[#allocation6 + $0x30] sm:$0xf]
      %v1746 = vld [vmem:[#allocation6 + $0x34] sm:$0xf]
      %v1747 = vld [vmem:[#allocation6 + $0x38] sm:$0xf]
      %v1748 = vld [vmem:[#allocation6 + $0x3c] sm:$0xf]
      %v1749 = vld [vmem:[#allocation6 + $0x40] sm:$0xf]
      %v1750 = vld [vmem:[#allocation6 + $0x44] sm:$0xf]
      %v1751 = vld [vmem:[#allocation6 + $0x48] sm:$0xf]
      %v1752 = vld [vmem:[#allocation6 + $0x4c] sm:$0xf]
      %v1753 = vld [vmem:[#allocation6 + $0x50] sm:$0xf]
      %v1754 = vld [vmem:[#allocation6 + $0x54] sm:$0xf]
      %v1755 = vld [vmem:[#allocation6 + $0x58] sm:$0xf]
      %v1756 = vld [vmem:[#allocation6 + $0x5c] sm:$0xf]
      %v1757 = vld [vmem:[#allocation6 + $0x60] sm:$0xf]
      %v1758 = vld [vmem:[#allocation6 + $0x64] sm:$0xf]
      %v1759 = vld [vmem:[#allocation6 + $0x68] sm:$0xf]
      %v1760 = vld [vmem:[#allocation6 + $0x6c] sm:$0xf]
      %v1761 = vld [vmem:[#allocation6 + $0x70] sm:$0xf]
      %v1762 = vld [vmem:[#allocation6 + $0x74] sm:$0xf]
      %v1763 = vld [vmem:[#allocation6 + $0x78] sm:$0xf]
      %v1764 = vld [vmem:[#allocation6 + $0x7c] sm:$0xf]
      %v1765 = vld [vmem:[#allocation6 + $0x80] sm:$0xf]
      %v1766 = vld [vmem:[#allocation6 + $0x84] sm:$0xf]
      %v1767 = vld [vmem:[#allocation6 + $0x88] sm:$0xf]
      %v1768 = vld [vmem:[#allocation6 + $0x8c] sm:$0xf]
      %v1769 = vld [vmem:[#allocation6 + $0x90] sm:$0xf]
      %v1770 = vld [vmem:[#allocation6 + $0x94] sm:$0xf]
      %v1771 = vld [vmem:[#allocation6 + $0x98] sm:$0xf]
      %v1772 = vld [vmem:[#allocation6 + $0x9c] sm:$0xf]
      %v1773 = vld [vmem:[#allocation6 + $0xa0] sm:$0xf]
      %v1774 = vld [vmem:[#allocation6 + $0xa4] sm:$0xf]
      %v1775 = vld [vmem:[#allocation6 + $0xa8] sm:$0xf]
      %v1776 = vld [vmem:[#allocation6 + $0xac] sm:$0xf]
      %v1777 = vld [vmem:[#allocation6 + $0xb0] sm:$0xf]
      %v1778 = vld [vmem:[#allocation6 + $0xb4] sm:$0xf]
      %v1779 = vld [vmem:[#allocation6 + $0xb8] sm:$0xf]
      %v1780 = vld [vmem:[#allocation6 + $0xbc] sm:$0xf]
      %v1781 = vld [vmem:[#allocation6 + $0xc0] sm:$0xf]
      %v1782 = vld [vmem:[#allocation6 + $0xc4] sm:$0xf]
      %v1783 = vld [vmem:[#allocation6 + $0xc8] sm:$0xf]
      %v1784 = vld [vmem:[#allocation6 + $0xcc] sm:$0xf]
      %v1785 = vld [vmem:[#allocation6 + $0xd0] sm:$0xf]
      %v1786 = vld [vmem:[#allocation6 + $0xd4] sm:$0xf]
      %v1787 = vld [vmem:[#allocation6 + $0xd8] sm:$0xf]
      %v1788 = vld [vmem:[#allocation6 + $0xdc] sm:$0xf]
      %v1789 = vld [vmem:[#allocation6 + $0xe0] sm:$0xf]
      %v1790 = vld [vmem:[#allocation6 + $0xe4] sm:$0xf]
      %v1791 = vld [vmem:[#allocation6 + $0xe8] sm:$0xf]
      %v1792 = vld [vmem:[#allocation6 + $0xec] sm:$0xf]
      %v1793 = vld [vmem:[#allocation6 + $0xf0] sm:$0xf]
      %v1794 = vld [vmem:[#allocation6 + $0xf4] sm:$0xf]
      %v1795 = vld [vmem:[#allocation6 + $0xf8] sm:$0xf]
      %v1796 = vld [vmem:[#allocation6 + $0xfc] sm:$0xf]
      %v1797 = vld [vmem:[%s7] sm:$0x1]
      %v1799 = vlaneseq
      %v1800 = vshrl.u32 %v1799, 7
      %v1801 = vsub.s32 0, %v1800
      %v1802 = vrot.slane %v1797, %v1801
      %v1868 = vunpack.c.l.b16 %v1733
      %v1869 = vunpack.c.l.b16 %v1734
      %v1870 = vunpack.c.l.b16 %v1735
      %v1871 = vunpack.c.l.b16 %v1736
      %v1872 = vunpack.c.l.b16 %v1737
      %v1873 = vunpack.c.l.b16 %v1738
      %v1874 = vunpack.c.l.b16 %v1739
      %v1875 = vunpack.c.l.b16 %v1740
      %v1876 = vunpack.c.l.b16 %v1741
      %v1877 = vunpack.c.l.b16 %v1742
      %v1878 = vunpack.c.l.b16 %v1743
      %v1879 = vunpack.c.l.b16 %v1744
      %v1880 = vunpack.c.l.b16 %v1745
      %v1881 = vunpack.c.l.b16 %v1746
      %v1882 = vunpack.c.l.b16 %v1747
      %v1883 = vunpack.c.l.b16 %v1748
      %v1884 = vunpack.c.l.b16 %v1749
      %v1885 = vunpack.c.l.b16 %v1750
      %v1886 = vunpack.c.l.b16 %v1751
      %v1887 = vunpack.c.l.b16 %v1752
      %v1888 = vunpack.c.l.b16 %v1753
      %v1889 = vunpack.c.l.b16 %v1754
      %v1890 = vunpack.c.l.b16 %v1755
      %v1891 = vunpack.c.l.b16 %v1756
      %v1892 = vunpack.c.l.b16 %v1757
      %v1893 = vunpack.c.l.b16 %v1758
      %v1894 = vunpack.c.l.b16 %v1759
      %v1895 = vunpack.c.l.b16 %v1760
      %v1896 = vunpack.c.l.b16 %v1761
      %v1897 = vunpack.c.l.b16 %v1762
      %v1898 = vunpack.c.l.b16 %v1763
      %v1899 = vunpack.c.l.b16 %v1764
      %v1900 = vunpack.c.l.b16 %v1765
      %v1901 = vunpack.c.l.b16 %v1766
      %v1902 = vunpack.c.l.b16 %v1767
      %v1903 = vunpack.c.l.b16 %v1768
      %v1904 = vunpack.c.l.b16 %v1769
      %v1905 = vunpack.c.l.b16 %v1770
      %v1906 = vunpack.c.l.b16 %v1771
      %v1907 = vunpack.c.l.b16 %v1772
      %v1908 = vunpack.c.l.b16 %v1773
      %v1909 = vunpack.c.l.b16 %v1774
      %v1910 = vunpack.c.l.b16 %v1775
      %v1911 = vunpack.c.l.b16 %v1776
      %v1912 = vunpack.c.l.b16 %v1777
      %v1913 = vunpack.c.l.b16 %v1778
      %v1914 = vunpack.c.l.b16 %v1779
      %v1915 = vunpack.c.l.b16 %v1780
      %v1916 = vunpack.c.l.b16 %v1781
      %v1917 = vunpack.c.l.b16 %v1782
      %v1918 = vunpack.c.l.b16 %v1783
      %v1919 = vunpack.c.l.b16 %v1784
      %v1920 = vunpack.c.l.b16 %v1785
      %v1921 = vunpack.c.l.b16 %v1786
      %v1922 = vunpack.c.l.b16 %v1787
      %v1923 = vunpack.c.l.b16 %v1788
      %v1924 = vunpack.c.l.b16 %v1789
      %v1925 = vunpack.c.l.b16 %v1790
      %v1926 = vunpack.c.l.b16 %v1791
      %v1927 = vunpack.c.l.b16 %v1792
      %v1928 = vunpack.c.l.b16 %v1793
      %v1929 = vunpack.c.l.b16 %v1794
      %v1930 = vunpack.c.l.b16 %v1795
      %v1931 = vunpack.c.l.b16 %v1796
      %v1932 = vpack.c.b16 %v1869, %v1868
      %v1933 = vpack.c.b16 %v1871, %v1870
      %v1934 = vpack.c.b16 %v1873, %v1872
      %v1935 = vpack.c.b16 %v1875, %v1874
      %v1936 = vpack.c.b16 %v1877, %v1876
      %v1937 = vpack.c.b16 %v1879, %v1878
      %v1938 = vpack.c.b16 %v1881, %v1880
      %v1939 = vpack.c.b16 %v1883, %v1882
      %v1940 = vpack.c.b16 %v1885, %v1884
      %v1941 = vpack.c.b16 %v1887, %v1886
      %v1942 = vpack.c.b16 %v1889, %v1888
      %v1943 = vpack.c.b16 %v1891, %v1890
      %v1944 = vpack.c.b16 %v1893, %v1892
      %v1945 = vpack.c.b16 %v1895, %v1894
      %v1946 = vpack.c.b16 %v1897, %v1896
      %v1947 = vpack.c.b16 %v1899, %v1898
      %v1948 = vpack.c.b16 %v1901, %v1900
      %v1949 = vpack.c.b16 %v1903, %v1902
      %v1950 = vpack.c.b16 %v1905, %v1904
      %v1951 = vpack.c.b16 %v1907, %v1906
      %v1952 = vpack.c.b16 %v1909, %v1908
      %v1953 = vpack.c.b16 %v1911, %v1910
      %v1954 = vpack.c.b16 %v1913, %v1912
      %v1955 = vpack.c.b16 %v1915, %v1914
      %v1956 = vpack.c.b16 %v1917, %v1916
      %v1957 = vpack.c.b16 %v1919, %v1918
      %v1958 = vpack.c.b16 %v1921, %v1920
      %v1959 = vpack.c.b16 %v1923, %v1922
      %v1960 = vpack.c.b16 %v1925, %v1924
      %v1961 = vpack.c.b16 %v1927, %v1926
      %v1962 = vpack.c.b16 %v1929, %v1928
      %v1963 = vpack.c.b16 %v1931, %v1930
      %1996 = vmatprep.subr.bf16.mxu0 0
      %1997 = vmatpush1.bf16.msra.mxu0 %v1939
      %1998 = vmatprep.subr.bf16.mxu0 0
      %1999 = vmatpush1.bf16.msra.mxu0 %v1938
      %2000 = vmatprep.subr.bf16.mxu0 0
      %2001 = vmatpush1.bf16.msra.mxu0 %v1937
      %2002 = vmatprep.subr.bf16.mxu0 0
      %2003 = vmatpush1.bf16.msra.mxu0 %v1936
      %2004 = vmatprep.subr.bf16.mxu0 0
      %2005 = vmatpush1.bf16.msra.mxu0 %v1935
      %2006 = vmatprep.subr.bf16.mxu0 0
      %2007 = vmatpush1.bf16.msra.mxu0 %v1934
      %2008 = vmatprep.subr.bf16.mxu0 0
      %2009 = vmatpush1.bf16.msra.mxu0 %v1933
      %2010 = vmatprep.subr.bf16.mxu0 0
      %2011 = vmatpush1.bf16.msra.mxu0 %v1932
      %2012 = vmatprep.subr.bf16.mxu0 0
      %2013 = vmatpush2.bf16.msra.mxu0 %v1947
      %2014 = vmatprep.subr.bf16.mxu0 0
      %2015 = vmatpush2.bf16.msra.mxu0 %v1946
      %2016 = vmatprep.subr.bf16.mxu0 0
      %2017 = vmatpush2.bf16.msra.mxu0 %v1945
      %2018 = vmatprep.subr.bf16.mxu0 0
      %2019 = vmatpush2.bf16.msra.mxu0 %v1944
      %2020 = vmatprep.subr.bf16.mxu0 0
      %2021 = vmatpush2.bf16.msra.mxu0 %v1943
      %2022 = vmatprep.subr.bf16.mxu0 0
      %2023 = vmatpush2.bf16.msra.mxu0 %v1942
      %2024 = vmatprep.subr.bf16.mxu0 0
      %2025 = vmatpush2.bf16.msra.mxu0 %v1941
      %2026 = vmatprep.subr.bf16.mxu0 0
      %2027 = vmatpush2.bf16.msra.mxu0 %v1940
      %2028 = vmatprep.mubr.bf16.mxu0 %v1730
      %2029 = vmatmul.mubr.bf16.gmra.mxu0 %v1729
      %v2030 = vpop.f32.mrf.mxu0
      %v2031 = vadd.f32 %v1802, %v2030
      %v2032 = vpop.f32.mrf.mxu0
      %v2033 = vpop.f32.mrf.mxu0
      %v2034 = vpop.f32.mrf.mxu0
      %2035 = vdwg.mxu0
      %2036 = vmatprep.subr.bf16.mxu0 0
      %2037 = vmatpush1.bf16.msra.mxu0 %v1955
      %2038 = vmatprep.subr.bf16.mxu0 0
      %2039 = vmatpush1.bf16.msra.mxu0 %v1954
      %2040 = vmatprep.subr.bf16.mxu0 0
      %2041 = vmatpush1.bf16.msra.mxu0 %v1953
      %2042 = vmatprep.subr.bf16.mxu0 0
      %2043 = vmatpush1.bf16.msra.mxu0 %v1952
      %2044 = vmatprep.subr.bf16.mxu0 0
      %2045 = vmatpush1.bf16.msra.mxu0 %v1951
      %2046 = vmatprep.subr.bf16.mxu0 0
      %2047 = vmatpush1.bf16.msra.mxu0 %v1950
      %2048 = vmatprep.subr.bf16.mxu0 0
      %2049 = vmatpush1.bf16.msra.mxu0 %v1949
      %2050 = vmatprep.subr.bf16.mxu0 0
      %2051 = vmatpush1.bf16.msra.mxu0 %v1948
      %2052 = vmatprep.subr.bf16.mxu0 0
      %2053 = vmatpush2.bf16.msra.mxu0 %v1963
      %2054 = vmatprep.subr.bf16.mxu0 0
      %2055 = vmatpush2.bf16.msra.mxu0 %v1962
      %2056 = vmatprep.subr.bf16.mxu0 0
      %2057 = vmatpush2.bf16.msra.mxu0 %v1961
      %2058 = vmatprep.subr.bf16.mxu0 0
      %2059 = vmatpush2.bf16.msra.mxu0 %v1960
      %2060 = vmatprep.subr.bf16.mxu0 0
      %2061 = vmatpush2.bf16.msra.mxu0 %v1959
      %2062 = vmatprep.subr.bf16.mxu0 0
      %2063 = vmatpush2.bf16.msra.mxu0 %v1958
      %2064 = vmatprep.subr.bf16.mxu0 0
      %2065 = vmatpush2.bf16.msra.mxu0 %v1957
      %2066 = vmatprep.subr.bf16.mxu0 0
      %2067 = vmatpush2.bf16.msra.mxu0 %v1956
      %2068 = vmatprep.mubr.bf16.mxu0 %v1732
      %2069 = vmatmul.mubr.bf16.gmra.mxu0 %v1731
      %v2070 = vpop.f32.mrf.mxu0
      %v2071 = vadd.f32 %v2031, %v2070
      %v2072 = vpop.f32.mrf.mxu0
      %v2073 = vpop.f32.mrf.mxu0
      %v2074 = vpop.f32.mrf.mxu0
      %2075 = vdwg.mxu0
      %v2076 = vmax.f32 %v2071, 0.0
      %v2077 = vld [vmem:[%s8] sm:$0x1]
      %v2079 = vlaneseq
      %v2080 = vshrl.u32 %v2079, 7
      %v2081 = vsub.s32 0, %v2080
      %v2082 = vrot.slane %v2077, %v2081
      %v2084 = vmul.f32 %v2076, %v2082
      %2085 = vadd.xlane.f32.xlu0 %v2084
      %v2086 = vpop.xlane.xlu0 %2085
      %s2087 = sld [smem:[#allocation3]]
      %v2088 = vstv %s2087
      %v2089 = vadd.f32 %v2086, %v2088
      %v2090 = vxor.u32 %v2089, 2147483648
      %v2091 = vmul.f32 %v2090, 1.442695
      %v2092 = vpow.pop %v2091
      %v2093 = vadd.f32 %v2092, 1.0
      %v2094 = vrcp.pop %v2093
      %v2095 = vmul.f32 1.0, %v2094
      %2096 = vst [vmem:[%s10] sm:$0xff] %v2095
      %2097 = vst [vmem:[%s11] sm:$0xff] %v2089
    $region57: #{_siamese_forward_padded.1} parent=1 // pred_fallthru
      _
    // Predicated region
    $region58: #{_siamese_forward_padded.1} parent=1 // pred_check
      _
    $region59: #{_siamese_forward_padded.1} parent=1 // pred_check_branch
      %2099 = sbr.rel (0) target = $region61
    $region60: #{_siamese_forward_padded.1} parent=1 // pred_region
      _
    $region61: #{_siamese_forward_padded.1} parent=1 // pred_fallthru
      _
    // Predicated region
    $region62: #{_siamese_forward_padded.1} parent=1 // pred_check
      _
    $region63: #{_siamese_forward_padded.1} parent=1 // pred_check_branch
      %2101 = sbr.rel (0) target = $region65
    $region64: #{_siamese_forward_padded.1} parent=1 // pred_region
      _
    $region65: #{_siamese_forward_padded.1} parent=1 // pred_fallthru
      _
    // Predicated region
    $region66: #{_siamese_forward_padded.1} parent=1 // pred_check
      _
    $region67: #{_siamese_forward_padded.1} parent=1 // pred_check_branch
      %2103 = sbr.rel (0) target = $region69
    $region68: #{_siamese_forward_padded.1} parent=1 // pred_region
      _
    $region69: #{_siamese_forward_padded.1} parent=1 // pred_fallthru
      _
    // Predicated region
    $region70: #{_siamese_forward_padded.1} parent=1 // pred_check
      _
    $region71: #{_siamese_forward_padded.1} parent=1 // pred_check_branch
      %2105 = sbr.rel (0) target = $region73
    $region72: #{_siamese_forward_padded.1} parent=1 // pred_region
      _
    $region73: #{_siamese_forward_padded.1} parent=1 // pred_fallthru
      _
    %2106 = vsyncpa [#allocation5], 1
    %2107 = vsyncpa [#allocation7], 1

</llo_original>
